<compile_context>
chip_gen: v7x
topology: tpu7x:2x2x1
jax: 0.10.0
libtpu: 0.0.40
codegen_flags: <defaults>
</compile_context>

<pallas_src>
import functools

import jax
import jax.numpy as jnp
from jax import lax
from jax.experimental import pallas as pl
from jax.experimental.pallas import tpu as pltpu

H = W = 16
Hp = H + 2                    # spatially padded height (SAME pad for 3x3)
Wp = W + 2                    # spatially padded width
SP = 384                      # Hp*Wp = 324 rounded up to a multiple of 128 lanes
PAD_L = 128                   # lane halo (>= max tap shift 19), lane-tile aligned
C_IN = 5
C_IN_P = 8                    # conv1 input channels zero-padded to a sublane group
C_MID = 16
C_OUT = 32
EPS = 1e-5


def _interior_mask():
    """(SP,) f32 mask: 1.0 on the 16x16 interior of the padded 18x18 image."""
    yy = jnp.arange(Hp).reshape(Hp, 1)
    xx = jnp.arange(Wp).reshape(1, Wp)
    m = ((yy >= 1) & (yy <= H) & (xx >= 1) & (xx <= W)).astype(jnp.float32)
    return jnp.pad(m.reshape(Hp * Wp), (0, SP - Hp * Wp))


def tiny_cnn_kernel(x_ref, mask_ref, w1_ref, s1_ref, b1_ref,
                    w2_ref, s2_ref, b2_ref, pool_ref, o_ref):
    xs = x_ref[0]                               # (C_IN_P, lane_ext) bf16
    lane_ext = xs.shape[1]
    lanes = lane_ext - 2 * PAD_L                # b_tile * SP
    g_lanes, g = pool_ref.shape                 # (G*SP, G)
    n_groups = lanes // g_lanes
    mask = mask_ref[...]                        # (1, lanes) f32, 1.0 on interior

    def taps_of(h_ext, dys):
        # Tap (dy, dx) of the 3x3 kernel == constant lane shift of the slab.
        taps = []
        for dy in dys:
            for dx in range(3):
                start = PAD_L + (dy - 1) * Wp + (dx - 1)
                taps.append(h_ext[:, start:start + lanes])
        return jnp.concatenate(taps, axis=0)    # (len(dys)*3*Cin, lanes) bf16

    # ---- conv1: one K=72 bf16 MXU dot + folded conv-bias/BN + ReLU ----
    p1 = taps_of(xs, (0, 1, 2))                                  # (72, lanes)
    a1 = jnp.dot(w1_ref[...], p1, preferred_element_type=jnp.float32)
    h1 = jnp.maximum(a1 * s1_ref[...] + b1_ref[...], 0.0)
    # mask realizes conv2's SAME zero padding and zeroes the lane-rounding slack
    h1 = (h1 * mask).astype(jnp.bfloat16)                        # (C_MID, lanes)

    zpad = jnp.zeros((C_MID, PAD_L), jnp.bfloat16)
    h1_ext = jnp.concatenate([zpad, h1, zpad], axis=1)           # lane-tile aligned

    # ---- conv2: K=144 split into 3 accumulated dy-group dots (K=48 each) ----
    w2m = w2_ref[...]                                            # (C_OUT, 144) bf16
    a2 = None
    for dy in range(3):
        p2 = taps_of(h1_ext, (dy,))                              # (48, lanes) bf16
        d = jnp.dot(w2m[:, dy * 3 * C_MID:(dy + 1) * 3 * C_MID], p2,
                    preferred_element_type=jnp.float32)
        a2 = d if a2 is None else a2 + d
    h2 = jnp.maximum(a2 * s2_ref[...] + b2_ref[...], 0.0).astype(jnp.bfloat16)

    # ---- AdaptiveAvgPool2d(1) on the MXU: block-diag mask/(H*W) matrix ----
    parts = []
    for grp in range(n_groups):
        seg = h2[:, grp * g_lanes:(grp + 1) * g_lanes]           # lane-tile aligned
        parts.append(jnp.dot(seg, pool_ref[...],
                             preferred_element_type=jnp.float32))  # (C_OUT, G)
    o_ref[0] = parts[0] if n_groups == 1 else jnp.concatenate(parts, axis=1)


def _default_tiling():
    """(b_tile, vmem_limit_bytes) chosen from this chip's VMEM capacity."""
    try:
        vmem = int(pltpu.get_tpu_info().vmem_capacity_bytes)
    except Exception:
        vmem = 64 * 1024 * 1024            # conservative (v7x-sized) fallback
    if vmem >= 100 * 1024 * 1024:          # v5e / v6e: 128 MiB VMEM
        return 128, 80 * 1024 * 1024
    return 64, 40 * 1024 * 1024            # v7x: 64 MiB VMEM


def _pool_group(b_tile):
    """Largest divisor of b_tile that is <= 32 (bounds the pool matrix VMEM)."""
    g = min(b_tile, 32)
    while b_tile % g:
        g -= 1
    return g


@functools.partial(jax.jit, static_argnames=("b_tile", "vmem_limit"))
def _tiny_cnn_impl(x_nchw, w1, s1, b1, w2, s2, b2, *, b_tile, vmem_limit):
    n = x_nchw.shape[0]
    n_blocks = -(-n // b_tile)
    n_pad = n_blocks * b_tile
    lanes = b_tile * SP
    lane_ext = lanes + 2 * PAD_L
    g = _pool_group(b_tile)

    # ---- input prep: bf16 lane-dense "spatial-on-lanes" slab (stays NCHW) ----
    x = x_nchw.astype(jnp.bfloat16)
    x = jnp.pad(x, ((0, n_pad - n), (0, C_IN_P - C_IN), (1, 1), (1, 1)))
    x = x.reshape(n_pad, C_IN_P, Hp * Wp)
    x = jnp.pad(x, ((0, 0), (0, 0), (0, SP - Hp * Wp)))          # round to SP lanes
    x = x.reshape(n_blocks, b_tile, C_IN_P, SP).transpose(0, 2, 1, 3)
    x = x.reshape(n_blocks, C_IN_P, lanes)
    x = jnp.pad(x, ((0, 0), (0, 0), (PAD_L, PAD_L)))             # zero lane halo

    # weights -> (Cout, 9*Cin) bf16, tap-major (dy, dx), channel-minor
    w1r = jnp.transpose(w1, (3, 0, 1, 2))                        # (16, 3, 3, 5)
    w1r = jnp.pad(w1r, ((0, 0), (0, 0), (0, 0), (0, C_IN_P - C_IN)))
    w1r = w1r.reshape(C_MID, 9 * C_IN_P).astype(jnp.bfloat16)
    w2r = jnp.transpose(w2, (3, 0, 1, 2)).reshape(C_OUT, 9 * C_MID)
    w2r = w2r.astype(jnp.bfloat16)
    s1c = s1.reshape(C_MID, 1).astype(jnp.float32)
    b1c = b1.reshape(C_MID, 1).astype(jnp.float32)
    s2c = s2.reshape(C_OUT, 1).astype(jnp.float32)
    b2c = b2.reshape(C_OUT, 1).astype(jnp.float32)

    # interior mask over one image's SP lanes, tiled over the batch tile.
    m = _interior_mask()
    mask = jnp.tile(m, (b_tile,)).reshape(1, lanes)

    # block-diagonal pooling matrix for one group of g images: mask / (H*W).
    pool = jnp.eye(g, dtype=jnp.float32)[:, None, :] * (m / (H * W))[None, :, None]
    pool = pool.reshape(g * SP, g).astype(jnp.bfloat16)

    out = pl.pallas_call(
        tiny_cnn_kernel,
        out_shape=jax.ShapeDtypeStruct((n_blocks, C_OUT, b_tile), jnp.float32),
        grid_spec=pltpu.PrefetchScalarGridSpec(
            num_scalar_prefetch=0,
            grid=(n_blocks,),
            in_specs=[
                pl.BlockSpec((1, C_IN_P, lane_ext), lambda i: (i, 0, 0)),
                pl.BlockSpec((1, lanes), lambda i: (0, 0)),
                pl.BlockSpec((C_MID, 9 * C_IN_P), lambda i: (0, 0)),
                pl.BlockSpec((C_MID, 1), lambda i: (0, 0)),
                pl.BlockSpec((C_MID, 1), lambda i: (0, 0)),
                pl.BlockSpec((C_OUT, 9 * C_MID), lambda i: (0, 0)),
                pl.BlockSpec((C_OUT, 1), lambda i: (0, 0)),
                pl.BlockSpec((C_OUT, 1), lambda i: (0, 0)),
                pl.BlockSpec((g * SP, g), lambda i: (0, 0)),
            ],
            out_specs=pl.BlockSpec((1, C_OUT, b_tile), lambda i: (i, 0, 0)),
        ),
        compiler_params=pltpu.CompilerParams(
            dimension_semantics=("parallel",),
            vmem_limit_bytes=vmem_limit),
    )(x, mask, w1r, s1c, b1c, w2r, s2c, b2c, pool)

    # (n_blocks, C_OUT, b_tile) -> (N, C_OUT)
    out = jnp.transpose(out, (0, 2, 1)).reshape(n_pad, C_OUT)
    return out[:n]


def tiny_cnn_forward(x_nchw, w1, s1, b1, w2, s2, b2, *, b_tile=None):
    n = x_nchw.shape[0]
    default_bt, vmem_limit = _default_tiling()
    if b_tile is None:
        b_tile = default_bt
    if n >= 2:
        # keep at least 2 grid blocks so both v7x TensorCores get work
        b_tile = min(b_tile, -(-n // 2))
    b_tile = max(1, min(b_tile, n))
    return _tiny_cnn_impl(x_nchw, w1, s1, b1, w2, s2, b2,
                          b_tile=b_tile, vmem_limit=vmem_limit)


def reference_forward(x_nchw, w1, bconv1, g1, be1, m1, v1,
                      w2, bconv2, g2, be2, m2, v2):
    """Pure-JAX f32 reference matching PyTorch (eval-mode BatchNorm) semantics."""
    x = jnp.transpose(x_nchw, (0, 2, 3, 1)).astype(jnp.float32)
    dn = ('NHWC', 'HWIO', 'NHWC')
    y = lax.conv_general_dilated(x, w1, (1, 1), 'SAME', dimension_numbers=dn)
    y = y + bconv1
    y = (y - m1) / jnp.sqrt(v1 + EPS) * g1 + be1
    y = jnp.maximum(y, 0.0)
    y = lax.conv_general_dilated(y, w2, (1, 1), 'SAME', dimension_numbers=dn)
    y = y + bconv2
    y = (y - m2) / jnp.sqrt(v2 + EPS) * g2 + be2
    y = jnp.maximum(y, 0.0)
    return jnp.mean(y, axis=(1, 2))  # (N, 32)


def make_params(key):
    ks = jax.random.split(key, 12)
    w1 = 0.1 * jax.random.normal(ks[0], (3, 3, C_IN, C_MID), jnp.float32)
    bconv1 = 0.1 * jax.random.normal(ks[1], (C_MID,), jnp.float32)
    g1 = 1.0 + 0.1 * jax.random.normal(ks[2], (C_MID,), jnp.float32)
    be1 = 0.1 * jax.random.normal(ks[3], (C_MID,), jnp.float32)
    m1 = 0.1 * jax.random.normal(ks[4], (C_MID,), jnp.float32)
    v1 = jax.random.uniform(ks[5], (C_MID,), jnp.float32, 0.5, 1.5)

    w2 = 0.1 * jax.random.normal(ks[6], (3, 3, C_MID, C_OUT), jnp.float32)
    bconv2 = 0.1 * jax.random.normal(ks[7], (C_OUT,), jnp.float32)
    g2 = 1.0 + 0.1 * jax.random.normal(ks[8], (C_OUT,), jnp.float32)
    be2 = 0.1 * jax.random.normal(ks[9], (C_OUT,), jnp.float32)
    m2 = 0.1 * jax.random.normal(ks[10], (C_OUT,), jnp.float32)
    v2 = jax.random.uniform(ks[11], (C_OUT,), jnp.float32, 0.5, 1.5)
    return (w1, bconv1, g1, be1, m1, v1, w2, bconv2, g2, be2, m2, v2)


def fold_bn(bconv, gamma, beta, mean, var):
    scale = gamma / jnp.sqrt(var + EPS)
    shift = beta + (bconv - mean) * scale
    return scale, shift


if __name__ == "__main__":
    key = jax.random.PRNGKey(0)
    k_x, k_p = jax.random.split(key)

    x = jax.random.normal(k_x, (2, C_IN, H, W), jnp.float32)  # NCHW like PyTorch
    (w1, bconv1, g1, be1, m1, v1,
     w2, bconv2, g2, be2, m2, v2) = make_params(k_p)

    s1, b1 = fold_bn(bconv1, g1, be1, m1, v1)
    s2, b2 = fold_bn(bconv2, g2, be2, m2, v2)

    out = tiny_cnn_forward(x, w1, s1, b1, w2, s2, b2)
    out = jax.block_until_ready(out)

    ref = reference_forward(x, w1, bconv1, g1, be1, m1, v1,
                            w2, bconv2, g2, be2, m2, v2)
    ref = jax.block_until_ready(ref)

    assert out.shape == (2, C_OUT)
    max_err = float(jnp.max(jnp.abs(out - ref)))
    # bf16 input/patches/weights (f32 accumulation) => relaxed tolerance
    assert jnp.allclose(out, ref, atol=1e-2, rtol=1e-2), (
        f"mismatch: max abs err {max_err}")
    print("KERNEL_OK")
</pallas_src>

<mosaic_0001>
module attributes {stable_mosaic.version = 11 : i64} {
  func.func @tiny_cnn_kernel(%arg0: i32, %arg1: memref<1x8x640xbf16, #tpu.memory_space<vmem>>, %arg2: memref<1x384xf32, #tpu.memory_space<vmem>>, %arg3: memref<16x72xbf16, #tpu.memory_space<vmem>>, %arg4: memref<16x1xf32, #tpu.memory_space<vmem>>, %arg5: memref<16x1xf32, #tpu.memory_space<vmem>>, %arg6: memref<32x144xbf16, #tpu.memory_space<vmem>>, %arg7: memref<32x1xf32, #tpu.memory_space<vmem>>, %arg8: memref<32x1xf32, #tpu.memory_space<vmem>>, %arg9: memref<384x1xbf16, #tpu.memory_space<vmem>>, %arg10: memref<1x32x1xf32, #tpu.memory_space<vmem>>) attributes {dimension_semantics = [#tpu.dimension_semantics<parallel>], iteration_bounds = array<i64: 2>, scalar_prefetch = 0 : i64, scratch_operands = 0 : i64, tpu.core_type = #tpu.core_type<tc>, window_params = [{transform_indices = @transform_0, window_bounds = array<i64: 1, 8, 640>}, {pipeline_mode = #tpu.pipeline_mode<synchronous>, transform_indices = @transform_1, window_bounds = array<i64: 1, 384>}, {pipeline_mode = #tpu.pipeline_mode<synchronous>, transform_indices = @transform_2, window_bounds = array<i64: 16, 72>}, {pipeline_mode = #tpu.pipeline_mode<synchronous>, transform_indices = @transform_3, window_bounds = array<i64: 16, 1>}, {pipeline_mode = #tpu.pipeline_mode<synchronous>, transform_indices = @transform_4, window_bounds = array<i64: 16, 1>}, {pipeline_mode = #tpu.pipeline_mode<synchronous>, transform_indices = @transform_5, window_bounds = array<i64: 32, 144>}, {pipeline_mode = #tpu.pipeline_mode<synchronous>, transform_indices = @transform_6, window_bounds = array<i64: 32, 1>}, {pipeline_mode = #tpu.pipeline_mode<synchronous>, transform_indices = @transform_7, window_bounds = array<i64: 32, 1>}, {pipeline_mode = #tpu.pipeline_mode<synchronous>, transform_indices = @transform_8, window_bounds = array<i64: 384, 1>}, {transform_indices = @transform_9, window_bounds = array<i64: 1, 32, 1>}]} {
    %c0 = arith.constant 0 : index
    %c0_0 = arith.constant 0 : index
    %c0_1 = arith.constant 0 : index
    %0 = vector.load %arg1[%c0, %c0_0, %c0_1] : memref<1x8x640xbf16, #tpu.memory_space<vmem>>, vector<1x8x640xbf16>
    %1 = vector.shape_cast %0 : vector<1x8x640xbf16> to vector<8x640xbf16>
    %c0_2 = arith.constant 0 : index
    %c0_3 = arith.constant 0 : index
    %2 = vector.load %arg2[%c0_2, %c0_3] : memref<1x384xf32, #tpu.memory_space<vmem>>, vector<1x384xf32>
    %3 = vector.extract_strided_slice %1 {offsets = [0, 109], sizes = [8, 384], strides = [1, 1]} : vector<8x640xbf16> to vector<8x384xbf16>
    %4 = vector.extract_strided_slice %1 {offsets = [0, 110], sizes = [8, 384], strides = [1, 1]} : vector<8x640xbf16> to vector<8x384xbf16>
    %5 = vector.extract_strided_slice %1 {offsets = [0, 111], sizes = [8, 384], strides = [1, 1]} : vector<8x640xbf16> to vector<8x384xbf16>
    %6 = vector.extract_strided_slice %1 {offsets = [0, 127], sizes = [8, 384], strides = [1, 1]} : vector<8x640xbf16> to vector<8x384xbf16>
    %7 = vector.extract_strided_slice %1 {offsets = [0, 128], sizes = [8, 384], strides = [1, 1]} : vector<8x640xbf16> to vector<8x384xbf16>
    %8 = vector.extract_strided_slice %1 {offsets = [0, 129], sizes = [8, 384], strides = [1, 1]} : vector<8x640xbf16> to vector<8x384xbf16>
    %9 = vector.extract_strided_slice %1 {offsets = [0, 145], sizes = [8, 384], strides = [1, 1]} : vector<8x640xbf16> to vector<8x384xbf16>
    %10 = vector.extract_strided_slice %1 {offsets = [0, 146], sizes = [8, 384], strides = [1, 1]} : vector<8x640xbf16> to vector<8x384xbf16>
    %11 = vector.extract_strided_slice %1 {offsets = [0, 147], sizes = [8, 384], strides = [1, 1]} : vector<8x640xbf16> to vector<8x384xbf16>
    %12 = tpu.concatenate %3, %4, %5, %6, %7, %8, %9, %10, %11 in 0 : vector<8x384xbf16>, vector<8x384xbf16>, vector<8x384xbf16>, vector<8x384xbf16>, vector<8x384xbf16>, vector<8x384xbf16>, vector<8x384xbf16>, vector<8x384xbf16>, vector<8x384xbf16> -> vector<72x384xbf16>
    %c0_4 = arith.constant 0 : index
    %c0_5 = arith.constant 0 : index
    %13 = vector.load %arg3[%c0_4, %c0_5] : memref<16x72xbf16, #tpu.memory_space<vmem>>, vector<16x72xbf16>
    %cst = arith.constant dense<0.000000e+00> : vector<16x384xf32>
    %14 = tpu.matmul %13, %12, %cst {dimension_numbers = #tpu.dot_dimension_numbers<[1], [0], [0], [1], [0, 0, 1, 1], [], []>} : vector<16x72xbf16>, vector<72x384xbf16>, vector<16x384xf32> -> vector<16x384xf32>
    %c0_6 = arith.constant 0 : index
    %c0_7 = arith.constant 0 : index
    %15 = vector.load %arg4[%c0_6, %c0_7] : memref<16x1xf32, #tpu.memory_space<vmem>>, vector<16x1xf32>
    %16 = vector.broadcast %15 : vector<16x1xf32> to vector<16x384xf32>
    %17 = arith.mulf %14, %16 : vector<16x384xf32>
    %c0_8 = arith.constant 0 : index
    %c0_9 = arith.constant 0 : index
    %18 = vector.load %arg5[%c0_8, %c0_9] : memref<16x1xf32, #tpu.memory_space<vmem>>, vector<16x1xf32>
    %19 = vector.broadcast %18 : vector<16x1xf32> to vector<16x384xf32>
    %20 = arith.addf %17, %19 : vector<16x384xf32>
    %cst_10 = arith.constant 0.000000e+00 : f32
    %21 = vector.broadcast %cst_10 : f32 to vector<16x384xf32>
    %22 = arith.maximumf %20, %21 : vector<16x384xf32>
    %23 = vector.broadcast %2 : vector<1x384xf32> to vector<16x384xf32>
    %24 = arith.mulf %22, %23 : vector<16x384xf32>
    %25 = arith.truncf %24 : vector<16x384xf32> to vector<16x384xbf16>
    %cst_11 = arith.constant 0.000000e+00 : bf16
    %26 = vector.broadcast %cst_11 : bf16 to vector<16x128xbf16>
    %27 = tpu.concatenate %26, %25, %26 in 1 : vector<16x128xbf16>, vector<16x384xbf16>, vector<16x128xbf16> -> vector<16x640xbf16>
    %c0_12 = arith.constant 0 : index
    %c0_13 = arith.constant 0 : index
    %28 = vector.load %arg6[%c0_12, %c0_13] : memref<32x144xbf16, #tpu.memory_space<vmem>>, vector<32x144xbf16>
    %29 = vector.extract_strided_slice %27 {offsets = [0, 109], sizes = [16, 384], strides = [1, 1]} : vector<16x640xbf16> to vector<16x384xbf16>
    %30 = vector.extract_strided_slice %27 {offsets = [0, 110], sizes = [16, 384], strides = [1, 1]} : vector<16x640xbf16> to vector<16x384xbf16>
    %31 = vector.extract_strided_slice %27 {offsets = [0, 111], sizes = [16, 384], strides = [1, 1]} : vector<16x640xbf16> to vector<16x384xbf16>
    %32 = tpu.concatenate %29, %30, %31 in 0 : vector<16x384xbf16>, vector<16x384xbf16>, vector<16x384xbf16> -> vector<48x384xbf16>
    %33 = vector.extract_strided_slice %28 {offsets = [0, 0], sizes = [32, 48], strides = [1, 1]} : vector<32x144xbf16> to vector<32x48xbf16>
    %cst_14 = arith.constant dense<0.000000e+00> : vector<32x384xf32>
    %34 = tpu.matmul %33, %32, %cst_14 {dimension_numbers = #tpu.dot_dimension_numbers<[1], [0], [0], [1], [0, 0, 1, 1], [], []>} : vector<32x48xbf16>, vector<48x384xbf16>, vector<32x384xf32> -> vector<32x384xf32>
    %35 = vector.extract_strided_slice %27 {offsets = [0, 127], sizes = [16, 384], strides = [1, 1]} : vector<16x640xbf16> to vector<16x384xbf16>
    %36 = vector.extract_strided_slice %27 {offsets = [0, 128], sizes = [16, 384], strides = [1, 1]} : vector<16x640xbf16> to vector<16x384xbf16>
    %37 = vector.extract_strided_slice %27 {offsets = [0, 129], sizes = [16, 384], strides = [1, 1]} : vector<16x640xbf16> to vector<16x384xbf16>
    %38 = tpu.concatenate %35, %36, %37 in 0 : vector<16x384xbf16>, vector<16x384xbf16>, vector<16x384xbf16> -> vector<48x384xbf16>
    %39 = vector.extract_strided_slice %28 {offsets = [0, 48], sizes = [32, 48], strides = [1, 1]} : vector<32x144xbf16> to vector<32x48xbf16>
    %cst_15 = arith.constant dense<0.000000e+00> : vector<32x384xf32>
    %40 = tpu.matmul %39, %38, %cst_15 {dimension_numbers = #tpu.dot_dimension_numbers<[1], [0], [0], [1], [0, 0, 1, 1], [], []>} : vector<32x48xbf16>, vector<48x384xbf16>, vector<32x384xf32> -> vector<32x384xf32>
    %41 = arith.addf %34, %40 : vector<32x384xf32>
    %42 = vector.extract_strided_slice %27 {offsets = [0, 145], sizes = [16, 384], strides = [1, 1]} : vector<16x640xbf16> to vector<16x384xbf16>
    %43 = vector.extract_strided_slice %27 {offsets = [0, 146], sizes = [16, 384], strides = [1, 1]} : vector<16x640xbf16> to vector<16x384xbf16>
    %44 = vector.extract_strided_slice %27 {offsets = [0, 147], sizes = [16, 384], strides = [1, 1]} : vector<16x640xbf16> to vector<16x384xbf16>
    %45 = tpu.concatenate %42, %43, %44 in 0 : vector<16x384xbf16>, vector<16x384xbf16>, vector<16x384xbf16> -> vector<48x384xbf16>
    %46 = vector.extract_strided_slice %28 {offsets = [0, 96], sizes = [32, 48], strides = [1, 1]} : vector<32x144xbf16> to vector<32x48xbf16>
    %cst_16 = arith.constant dense<0.000000e+00> : vector<32x384xf32>
    %47 = tpu.matmul %46, %45, %cst_16 {dimension_numbers = #tpu.dot_dimension_numbers<[1], [0], [0], [1], [0, 0, 1, 1], [], []>} : vector<32x48xbf16>, vector<48x384xbf16>, vector<32x384xf32> -> vector<32x384xf32>
    %48 = arith.addf %41, %47 : vector<32x384xf32>
    %c0_17 = arith.constant 0 : index
    %c0_18 = arith.constant 0 : index
    %49 = vector.load %arg7[%c0_17, %c0_18] : memref<32x1xf32, #tpu.memory_space<vmem>>, vector<32x1xf32>
    %50 = vector.broadcast %49 : vector<32x1xf32> to vector<32x384xf32>
    %51 = arith.mulf %48, %50 : vector<32x384xf32>
    %c0_19 = arith.constant 0 : index
    %c0_20 = arith.constant 0 : index
    %52 = vector.load %arg8[%c0_19, %c0_20] : memref<32x1xf32, #tpu.memory_space<vmem>>, vector<32x1xf32>
    %53 = vector.broadcast %52 : vector<32x1xf32> to vector<32x384xf32>
    %54 = arith.addf %51, %53 : vector<32x384xf32>
    %cst_21 = arith.constant 0.000000e+00 : f32
    %55 = vector.broadcast %cst_21 : f32 to vector<32x384xf32>
    %56 = arith.maximumf %54, %55 : vector<32x384xf32>
    %57 = arith.truncf %56 : vector<32x384xf32> to vector<32x384xbf16>
    %c0_22 = arith.constant 0 : index
    %c0_23 = arith.constant 0 : index
    %58 = vector.load %arg9[%c0_22, %c0_23] : memref<384x1xbf16, #tpu.memory_space<vmem>>, vector<384x1xbf16>
    %cst_24 = arith.constant dense<0.000000e+00> : vector<32x1xf32>
    %59 = tpu.matmul %57, %58, %cst_24 {dimension_numbers = #tpu.dot_dimension_numbers<[1], [0], [0], [1], [0, 0, 1, 1], [], []>} : vector<32x384xbf16>, vector<384x1xbf16>, vector<32x1xf32> -> vector<32x1xf32>
    %c0_25 = arith.constant 0 : index
    %c0_26 = arith.constant 0 : index
    %c0_27 = arith.constant 0 : index
    %60 = vector.load %arg10[%c0_25, %c0_26, %c0_27] : memref<1x32x1xf32, #tpu.memory_space<vmem>>, vector<1x32x1xf32>
    %61 = vector.shape_cast %60 : vector<1x32x1xf32> to vector<32x1xf32>
    %62 = vector.shape_cast %59 : vector<32x1xf32> to vector<1x32x1xf32>
    tpu.vector_store %arg10[%c0_25, %c0_26, %c0_27], %62 {strides = array<i32>} : memref<1x32x1xf32, #tpu.memory_space<vmem>>, vector<1x32x1xf32>,
    return
  }
  func.func @transform_0(%arg0: i32) -> (i32, i32, i32) {
    %c0_i32 = arith.constant 0 : i32
    %c0_i32_0 = arith.constant 0 : i32
    %c0_i32_1 = arith.constant 0 : i32
    return %arg0, %c0_i32, %c0_i32_0 : i32, i32, i32
  }
  func.func @transform_1(%arg0: i32) -> (i32, i32) {
    %c0_i32 = arith.constant 0 : i32
    %c0_i32_0 = arith.constant 0 : i32
    %c0_i32_1 = arith.constant 0 : i32
    return %c0_i32, %c0_i32_0 : i32, i32
  }
  func.func @transform_2(%arg0: i32) -> (i32, i32) {
    %c0_i32 = arith.constant 0 : i32
    %c0_i32_0 = arith.constant 0 : i32
    %c0_i32_1 = arith.constant 0 : i32
    return %c0_i32, %c0_i32_0 : i32, i32
  }
  func.func @transform_3(%arg0: i32) -> (i32, i32) {
    %c0_i32 = arith.constant 0 : i32
    %c0_i32_0 = arith.constant 0 : i32
    %c0_i32_1 = arith.constant 0 : i32
    return %c0_i32, %c0_i32_0 : i32, i32
  }
  func.func @transform_4(%arg0: i32) -> (i32, i32) {
    %c0_i32 = arith.constant 0 : i32
    %c0_i32_0 = arith.constant 0 : i32
    %c0_i32_1 = arith.constant 0 : i32
    return %c0_i32, %c0_i32_0 : i32, i32
  }
  func.func @transform_5(%arg0: i32) -> (i32, i32) {
    %c0_i32 = arith.constant 0 : i32
    %c0_i32_0 = arith.constant 0 : i32
    %c0_i32_1 = arith.constant 0 : i32
    return %c0_i32, %c0_i32_0 : i32, i32
  }
  func.func @transform_6(%arg0: i32) -> (i32, i32) {
    %c0_i32 = arith.constant 0 : i32
    %c0_i32_0 = arith.constant 0 : i32
    %c0_i32_1 = arith.constant 0 : i32
    return %c0_i32, %c0_i32_0 : i32, i32
  }
  func.func @transform_7(%arg0: i32) -> (i32, i32) {
    %c0_i32 = arith.constant 0 : i32
    %c0_i32_0 = arith.constant 0 : i32
    %c0_i32_1 = arith.constant 0 : i32
    return %c0_i32, %c0_i32_0 : i32, i32
  }
  func.func @transform_8(%arg0: i32) -> (i32, i32) {
    %c0_i32 = arith.constant 0 : i32
    %c0_i32_0 = arith.constant 0 : i32
    %c0_i32_1 = arith.constant 0 : i32
    return %c0_i32, %c0_i32_0 : i32, i32
  }
  func.func @transform_9(%arg0: i32) -> (i32, i32, i32) {
    %c0_i32 = arith.constant 0 : i32
    %c0_i32_0 = arith.constant 0 : i32
    %c0_i32_1 = arith.constant 0 : i32
    return %arg0, %c0_i32, %c0_i32_0 : i32, i32, i32
  }
}

</mosaic_0001>

<llo_original>
// kernel: _tiny_cnn_impl.1
$region0: #{_tiny_cnn_impl.1}
  #allocation0 [shape = 'u32[]', space=smem, size = 0x4, offset = 0x4, fixed_abs, tag = 'smem constant byte address 0x4 - core index']
  #allocation1 [shape = 'u32[144,128]{1,0:T(1,128)}', space=vmem, size = 0x12000, scoped, tag = 'internal scratch']
  %s0 = inlined_call_operand.vmem [shape: bf16[2,8,640], index: 0, kind: input, shape index: {}]
  %s1 = inlined_call_operand.vmem [shape: f32[1,384], index: 1, kind: input, shape index: {}]
  %s2 = inlined_call_operand.vmem [shape: bf16[16,72], index: 2, kind: input, shape index: {}]
  %s3 = inlined_call_operand.vmem [shape: f32[16,1], index: 3, kind: input, shape index: {}]
  %s4 = inlined_call_operand.vmem [shape: f32[16,1], index: 4, kind: input, shape index: {}]
  %s5 = inlined_call_operand.vmem [shape: bf16[32,144], index: 5, kind: input, shape index: {}]
  %s6 = inlined_call_operand.vmem [shape: f32[32,1], index: 6, kind: input, shape index: {}]
  %s7 = inlined_call_operand.vmem [shape: f32[32,1], index: 7, kind: input, shape index: {}]
  %s8 = inlined_call_operand.vmem [shape: bf16[384,1], index: 8, kind: input, shape index: {}]
  %s9 = inlined_call_operand.vmem [shape: f32[2,32,1], index: 9, kind: output, shape index: {}]
  %s10 = sld [smem:[#allocation0]]
  $region69: #{_tiny_cnn_impl.1} parent=0
    _
  %s12 = ssub.s32 1, %s10
  %s13 = scalar_select 0, %s12, %s10
  loop: start=0, step=1, limit=4
  $region2: #{_tiny_cnn_impl.1} parent=0 // loop_pre_header
    _
  $region3: #{_tiny_cnn_impl.1} parent=0 // loop_header
    %s15 = sphi 0, %s19
    %p16 = scmp.ge.s32.totalorder %s15, 4
    %s25 = sphi 0, %s27
    %s28 = sphi 0, %s25
    %s29 = sphi 0, %s28
    %s45 = sphi 0, %s29
    %s49 = sphi 0, %s49
    %s51 = sphi 0, %s49
    %s52 = sphi 0, %s51
    %s66 = sphi 0, %s52
    %s70 = sphi 0, %s70
    %s72 = sphi 0, %s70
    %s73 = sphi 0, %s72
    %s87 = sphi 0, %s73
    %s91 = sphi 0, %s91
    %s93 = sphi 0, %s91
    %s94 = sphi 0, %s93
    %s108 = sphi 0, %s94
    %s112 = sphi 0, %s112
    %s114 = sphi 0, %s112
    %s115 = sphi 0, %s114
    %s129 = sphi 0, %s115
    %s133 = sphi 0, %s133
    %s135 = sphi 0, %s133
    %s136 = sphi 0, %s135
    %s150 = sphi 0, %s136
    %s154 = sphi 0, %s154
    %s156 = sphi 0, %s154
    %s157 = sphi 0, %s156
    %s171 = sphi 0, %s157
    %s175 = sphi 0, %s175
    %s177 = sphi 0, %s175
    %s178 = sphi 0, %s177
    %s192 = sphi 0, %s178
    %s196 = sphi 0, %s196
    %s198 = sphi 0, %s196
    %s199 = sphi 0, %s198
    %s213 = sphi 0, %s199
    %s219 = sphi 0, %s221
    %s222 = sphi 0, %s219
    %s223 = sphi 0, %s222
    %s239 = sphi 0, %s223
  $region4: #{_tiny_cnn_impl.1} parent=0 // loop_header_branch
    %18 = sbr.rel (%p16) target = $region8
  $region5: #{_tiny_cnn_impl.1} parent=0 // loop_body
    %s20 = ssub.s32 %s15, 1
    %s21 = ssub.s32 %s15, 2
    %s22 = sadd.s32 %s15, 1
    %s23 = ssub.s32 %s15, %s22
    %p24 = scmp.eq.s32.totalorder %s23, 0
    %s26 = sadd.s32 %s25, 1
    %s27 = scalar_select %p24, %s25, %s26
    %p30 = pneg %p24
    %p31 = scmp.eq.s32.totalorder %s15, 1
    %p32 = por %p30, %p31
    %p33 = scmp.ne.s32.totalorder %s25, %s28
    %p34 = scmp.eq.s32.totalorder %s15, 0
    %p35 = por %p33, %p34
    %p36 = scmp.ne.s32.totalorder %s25, %s28
    %p37 = scmp.eq.s32.totalorder %s20, 1
    %p38 = por %p36, %p37
    %p39 = scmp.ne.s32.totalorder %s28, %s29
    %p40 = scmp.eq.s32.totalorder %s20, 0
    %p41 = por %p39, %p40
    %p42 = scmp.ne.s32.totalorder %s28, %s29
    %p43 = scmp.eq.s32.totalorder %s21, 1
    %p44 = por %p42, %p43
    %p46 = scmp.ne.s32.totalorder %s29, %s45
    %p47 = scmp.eq.s32.totalorder %s21, 0
    %p48 = por %p46, %p47
    %s50 = sadd.s32 %s49, 1
    %p53 = scmp.eq.s32.totalorder %s15, 1
    %p54 = scmp.ne.s32.totalorder %s49, %s51
    %p55 = scmp.eq.s32.totalorder %s15, 0
    %p56 = por %p54, %p55
    %p57 = scmp.ne.s32.totalorder %s49, %s51
    %p58 = scmp.eq.s32.totalorder %s20, 1
    %p59 = por %p57, %p58
    %p60 = scmp.ne.s32.totalorder %s51, %s52
    %p61 = scmp.eq.s32.totalorder %s20, 0
    %p62 = por %p60, %p61
    %p63 = scmp.ne.s32.totalorder %s51, %s52
    %p64 = scmp.eq.s32.totalorder %s21, 1
    %p65 = por %p63, %p64
    %p67 = scmp.ne.s32.totalorder %s52, %s66
    %p68 = scmp.eq.s32.totalorder %s21, 0
    %p69 = por %p67, %p68
    %s71 = sadd.s32 %s70, 1
    %p74 = scmp.eq.s32.totalorder %s15, 1
    %p75 = scmp.ne.s32.totalorder %s70, %s72
    %p76 = scmp.eq.s32.totalorder %s15, 0
    %p77 = por %p75, %p76
    %p78 = scmp.ne.s32.totalorder %s70, %s72
    %p79 = scmp.eq.s32.totalorder %s20, 1
    %p80 = por %p78, %p79
    %p81 = scmp.ne.s32.totalorder %s72, %s73
    %p82 = scmp.eq.s32.totalorder %s20, 0
    %p83 = por %p81, %p82
    %p84 = scmp.ne.s32.totalorder %s72, %s73
    %p85 = scmp.eq.s32.totalorder %s21, 1
    %p86 = por %p84, %p85
    %p88 = scmp.ne.s32.totalorder %s73, %s87
    %p89 = scmp.eq.s32.totalorder %s21, 0
    %p90 = por %p88, %p89
    %s92 = sadd.s32 %s91, 1
    %p95 = scmp.eq.s32.totalorder %s15, 1
    %p96 = scmp.ne.s32.totalorder %s91, %s93
    %p97 = scmp.eq.s32.totalorder %s15, 0
    %p98 = por %p96, %p97
    %p99 = scmp.ne.s32.totalorder %s91, %s93
    %p100 = scmp.eq.s32.totalorder %s20, 1
    %p101 = por %p99, %p100
    %p102 = scmp.ne.s32.totalorder %s93, %s94
    %p103 = scmp.eq.s32.totalorder %s20, 0
    %p104 = por %p102, %p103
    %p105 = scmp.ne.s32.totalorder %s93, %s94
    %p106 = scmp.eq.s32.totalorder %s21, 1
    %p107 = por %p105, %p106
    %p109 = scmp.ne.s32.totalorder %s94, %s108
    %p110 = scmp.eq.s32.totalorder %s21, 0
    %p111 = por %p109, %p110
    %s113 = sadd.s32 %s112, 1
    %p116 = scmp.eq.s32.totalorder %s15, 1
    %p117 = scmp.ne.s32.totalorder %s112, %s114
    %p118 = scmp.eq.s32.totalorder %s15, 0
    %p119 = por %p117, %p118
    %p120 = scmp.ne.s32.totalorder %s112, %s114
    %p121 = scmp.eq.s32.totalorder %s20, 1
    %p122 = por %p120, %p121
    %p123 = scmp.ne.s32.totalorder %s114, %s115
    %p124 = scmp.eq.s32.totalorder %s20, 0
    %p125 = por %p123, %p124
    %p126 = scmp.ne.s32.totalorder %s114, %s115
    %p127 = scmp.eq.s32.totalorder %s21, 1
    %p128 = por %p126, %p127
    %p130 = scmp.ne.s32.totalorder %s115, %s129
    %p131 = scmp.eq.s32.totalorder %s21, 0
    %p132 = por %p130, %p131
    %s134 = sadd.s32 %s133, 1
    %p137 = scmp.eq.s32.totalorder %s15, 1
    %p138 = scmp.ne.s32.totalorder %s133, %s135
    %p139 = scmp.eq.s32.totalorder %s15, 0
    %p140 = por %p138, %p139
    %p141 = scmp.ne.s32.totalorder %s133, %s135
    %p142 = scmp.eq.s32.totalorder %s20, 1
    %p143 = por %p141, %p142
    %p144 = scmp.ne.s32.totalorder %s135, %s136
    %p145 = scmp.eq.s32.totalorder %s20, 0
    %p146 = por %p144, %p145
    %p147 = scmp.ne.s32.totalorder %s135, %s136
    %p148 = scmp.eq.s32.totalorder %s21, 1
    %p149 = por %p147, %p148
    %p151 = scmp.ne.s32.totalorder %s136, %s150
    %p152 = scmp.eq.s32.totalorder %s21, 0
    %p153 = por %p151, %p152
    %s155 = sadd.s32 %s154, 1
    %p158 = scmp.eq.s32.totalorder %s15, 1
    %p159 = scmp.ne.s32.totalorder %s154, %s156
    %p160 = scmp.eq.s32.totalorder %s15, 0
    %p161 = por %p159, %p160
    %p162 = scmp.ne.s32.totalorder %s154, %s156
    %p163 = scmp.eq.s32.totalorder %s20, 1
    %p164 = por %p162, %p163
    %p165 = scmp.ne.s32.totalorder %s156, %s157
    %p166 = scmp.eq.s32.totalorder %s20, 0
    %p167 = por %p165, %p166
    %p168 = scmp.ne.s32.totalorder %s156, %s157
    %p169 = scmp.eq.s32.totalorder %s21, 1
    %p170 = por %p168, %p169
    %p172 = scmp.ne.s32.totalorder %s157, %s171
    %p173 = scmp.eq.s32.totalorder %s21, 0
    %p174 = por %p172, %p173
    %s176 = sadd.s32 %s175, 1
    %p179 = scmp.eq.s32.totalorder %s15, 1
    %p180 = scmp.ne.s32.totalorder %s175, %s177
    %p181 = scmp.eq.s32.totalorder %s15, 0
    %p182 = por %p180, %p181
    %p183 = scmp.ne.s32.totalorder %s175, %s177
    %p184 = scmp.eq.s32.totalorder %s20, 1
    %p185 = por %p183, %p184
    %p186 = scmp.ne.s32.totalorder %s177, %s178
    %p187 = scmp.eq.s32.totalorder %s20, 0
    %p188 = por %p186, %p187
    %p189 = scmp.ne.s32.totalorder %s177, %s178
    %p190 = scmp.eq.s32.totalorder %s21, 1
    %p191 = por %p189, %p190
    %p193 = scmp.ne.s32.totalorder %s178, %s192
    %p194 = scmp.eq.s32.totalorder %s21, 0
    %p195 = por %p193, %p194
    %s197 = sadd.s32 %s196, 1
    %p200 = scmp.eq.s32.totalorder %s15, 1
    %p201 = scmp.ne.s32.totalorder %s196, %s198
    %p202 = scmp.eq.s32.totalorder %s15, 0
    %p203 = por %p201, %p202
    %p204 = scmp.ne.s32.totalorder %s196, %s198
    %p205 = scmp.eq.s32.totalorder %s20, 1
    %p206 = por %p204, %p205
    %p207 = scmp.ne.s32.totalorder %s198, %s199
    %p208 = scmp.eq.s32.totalorder %s20, 0
    %p209 = por %p207, %p208
    %p210 = scmp.ne.s32.totalorder %s198, %s199
    %p211 = scmp.eq.s32.totalorder %s21, 1
    %p212 = por %p210, %p211
    %p214 = scmp.ne.s32.totalorder %s199, %s213
    %p215 = scmp.eq.s32.totalorder %s21, 0
    %p216 = por %p214, %p215
    %s217 = ssub.s32 %s15, %s22
    %p218 = scmp.eq.s32.totalorder %s217, 0
    %s220 = sadd.s32 %s219, 1
    %s221 = scalar_select %p218, %s219, %s220
    %p224 = pneg %p218
    %p225 = scmp.eq.s32.totalorder %s15, 1
    %p226 = por %p224, %p225
    %p227 = scmp.ne.s32.totalorder %s219, %s222
    %p228 = scmp.eq.s32.totalorder %s15, 0
    %p229 = por %p227, %p228
    %p230 = scmp.ne.s32.totalorder %s219, %s222
    %p231 = scmp.eq.s32.totalorder %s20, 1
    %p232 = por %p230, %p231
    %p233 = scmp.ne.s32.totalorder %s222, %s223
    %p234 = scmp.eq.s32.totalorder %s20, 0
    %p235 = por %p233, %p234
    %p236 = scmp.ne.s32.totalorder %s222, %s223
    %p237 = scmp.eq.s32.totalorder %s21, 1
    %p238 = por %p236, %p237
    %p240 = scmp.ne.s32.totalorder %s223, %s239
    %p241 = scmp.eq.s32.totalorder %s21, 0
    %p242 = por %p240, %p241
    %p243 = scmp.le.s32.totalorder 1, %s15
    %p244 = scmp.lt.s32.totalorder %s15, 3
    %p245 = pnand %p243, %p244
    %p246 = pneg %p245
    // Predicated region
    $region9: #{_tiny_cnn_impl.1} parent=5 // pred_check
      _
    $region10: #{_tiny_cnn_impl.1} parent=5 // pred_check_branch
      %248 = sbr.rel (%p245) target = $region12
    $region11: #{_tiny_cnn_impl.1} parent=5 // pred_region
      %s249 = ssub.s32 %s15, 1
      // Predicated region
      $region13: #{_tiny_cnn_impl.1} parent=11 // pred_check
        %p250 = pneg %p62
      $region14: #{_tiny_cnn_impl.1} parent=11 // pred_check_branch
        %252 = sbr.rel (%p250) target = $region16
      $region15: #{_tiny_cnn_impl.1} parent=11 // pred_region
        _
      $region16: #{_tiny_cnn_impl.1} parent=11 // pred_fallthru
        _
      // Predicated region
      $region17: #{_tiny_cnn_impl.1} parent=11 // pred_check
        %p253 = pneg %p83
      $region18: #{_tiny_cnn_impl.1} parent=11 // pred_check_branch
        %255 = sbr.rel (%p253) target = $region20
      $region19: #{_tiny_cnn_impl.1} parent=11 // pred_region
        _
      $region20: #{_tiny_cnn_impl.1} parent=11 // pred_fallthru
        _
      // Predicated region
      $region21: #{_tiny_cnn_impl.1} parent=11 // pred_check
        %p256 = pneg %p104
      $region22: #{_tiny_cnn_impl.1} parent=11 // pred_check_branch
        %258 = sbr.rel (%p256) target = $region24
      $region23: #{_tiny_cnn_impl.1} parent=11 // pred_region
        _
      $region24: #{_tiny_cnn_impl.1} parent=11 // pred_fallthru
        _
      // Predicated region
      $region25: #{_tiny_cnn_impl.1} parent=11 // pred_check
        %p259 = pneg %p125
      $region26: #{_tiny_cnn_impl.1} parent=11 // pred_check_branch
        %261 = sbr.rel (%p259) target = $region28
      $region27: #{_tiny_cnn_impl.1} parent=11 // pred_region
        _
      $region28: #{_tiny_cnn_impl.1} parent=11 // pred_fallthru
        _
      // Predicated region
      $region29: #{_tiny_cnn_impl.1} parent=11 // pred_check
        %p262 = pneg %p146
      $region30: #{_tiny_cnn_impl.1} parent=11 // pred_check_branch
        %264 = sbr.rel (%p262) target = $region32
      $region31: #{_tiny_cnn_impl.1} parent=11 // pred_region
        _
      $region32: #{_tiny_cnn_impl.1} parent=11 // pred_fallthru
        _
      // Predicated region
      $region33: #{_tiny_cnn_impl.1} parent=11 // pred_check
        %p265 = pneg %p167
      $region34: #{_tiny_cnn_impl.1} parent=11 // pred_check_branch
        %267 = sbr.rel (%p265) target = $region36
      $region35: #{_tiny_cnn_impl.1} parent=11 // pred_region
        _
      $region36: #{_tiny_cnn_impl.1} parent=11 // pred_fallthru
        _
      // Predicated region
      $region37: #{_tiny_cnn_impl.1} parent=11 // pred_check
        %p268 = pneg %p188
      $region38: #{_tiny_cnn_impl.1} parent=11 // pred_check_branch
        %270 = sbr.rel (%p268) target = $region40
      $region39: #{_tiny_cnn_impl.1} parent=11 // pred_region
        _
      $region40: #{_tiny_cnn_impl.1} parent=11 // pred_fallthru
        _
      // Predicated region
      $region41: #{_tiny_cnn_impl.1} parent=11 // pred_check
        %p271 = pneg %p209
      $region42: #{_tiny_cnn_impl.1} parent=11 // pred_check_branch
        %273 = sbr.rel (%p271) target = $region44
      $region43: #{_tiny_cnn_impl.1} parent=11 // pred_region
        _
      $region44: #{_tiny_cnn_impl.1} parent=11 // pred_fallthru
        _
    $region12: #{_tiny_cnn_impl.1} parent=5 // pred_fallthru
      _
    %p274 = scmp.lt.s32.totalorder %s15, 2
    // Predicated region
    $region45: #{_tiny_cnn_impl.1} parent=5 // pred_check
      %p275 = pneg %p274
    $region46: #{_tiny_cnn_impl.1} parent=5 // pred_check_branch
      %277 = sbr.rel (%p275) target = $region48
    $region47: #{_tiny_cnn_impl.1} parent=5 // pred_region
      // Predicated region
      $region49: #{_tiny_cnn_impl.1} parent=47 // pred_check
        %p278 = pneg %p35
      $region50: #{_tiny_cnn_impl.1} parent=47 // pred_check_branch
        %280 = sbr.rel (%p278) target = $region52
      $region51: #{_tiny_cnn_impl.1} parent=47 // pred_region
        %p281 = scmp.lt.s32.totalorder %s15, 1
        %s282 = scalar_select %p281, %s15, 1
        %s283 = smul.addr %s282, 5
        %s284 = smul.addr %s283, 4
        %s285 = scalar_lea.vmem %s0, %s284
      $region52: #{_tiny_cnn_impl.1} parent=47 // pred_fallthru
        _
    $region48: #{_tiny_cnn_impl.1} parent=5 // pred_fallthru
      _
    %p286 = scmp.le.s32.totalorder 1, %s15
    %p287 = scmp.lt.s32.totalorder %s15, 3
    %p288 = pnand %p286, %p287
    %p289 = pneg %p288
    // Predicated region
    $region53: #{_tiny_cnn_impl.1} parent=5 // pred_check
      _
    $region54: #{_tiny_cnn_impl.1} parent=5 // pred_check_branch
      %291 = sbr.rel (%p288) target = $region56
    $region55: #{_tiny_cnn_impl.1} parent=5 // pred_region
      %s292 = ssub.s32 %s15, 1
      %p293 = scmp.lt.s32.totalorder %s20, 1
      %s294 = scalar_select %p293, %s20, 1
      %s295 = smul.addr %s294, 5
      %s296 = smul.addr %s295, 4
      %s297 = scalar_lea.vmem %s0, %s296
      %p298 = pneg %p41
      %p299 = pneg %p38
      %p300 = pneg %p62
      %p301 = pneg %p59
      %p302 = pneg %p83
      %p303 = pneg %p80
      %p304 = pneg %p104
      %p305 = pneg %p101
      %p306 = pneg %p125
      %p307 = pneg %p122
      %p308 = pneg %p146
      %p309 = pneg %p143
      %p310 = pneg %p167
      %p311 = pneg %p164
      %p312 = pneg %p188
      %p313 = pneg %p185
      %p314 = pneg %p209
      %p315 = pneg %p206
      %p316 = pneg %p235
      %p317 = pneg %p232
      %p318 = scmp.lt.s32.totalorder %s20, 1
      %s319 = scalar_select %p318, %s20, 1
      %s320 = smul.addr %s319, 4
      %s321 = smul.addr %s320, 8
      %s322 = scalar_lea.vmem %s9, %s321
      %p323 = scmp.lt.s32.totalorder %s20, 1
      %s324 = scalar_select %p323, %s20, 1
      %s325 = smul.addr %s324, 5
      %s326 = smul.addr %s325, 4
      %s327 = scalar_lea.vmem %s0, %s326
      %p328 = scmp.lt.s32.totalorder %s20, 1
      %s329 = scalar_select %p328, %s20, 1
      %s330 = smul.addr %s329, 4
      %s331 = smul.addr %s330, 8
      %s332 = scalar_lea.vmem %s9, %s331
      %v334 = vld [vmem:[%s327] sm:$0xff]
      %v335 = vld [vmem:[%s327 + $0x8] sm:$0xff]
      %v336 = vld [vmem:[%s327 + $0x10] sm:$0xf]
      %v337 = vld [vmem:[%s1] sm:$0x7]
      %v340 = vunpack.c.l.b16 %v334
      %v341 = vunpack.c.h.b16 %v334
      %v342 = vunpack.c.l.b16 %v335
      %v343 = vunpack.c.h.b16 %v335
      %v344 = vpack.c.b16 %v340, %v340
      %v345 = vpack.c.b16 %v341, %v341
      %v346 = vpack.c.b16 %v342, %v342
      %v347 = vpack.c.b16 %v343, %v343
      %348 = vrot.lane.b32.xlu0 %v344, 127
      %v349 = vpop.permute.xlu0 %348
      %350 = vrot.lane.b32.xlu0 %v345, 127
      %v351 = vpop.permute.xlu0 %350
      %352 = vrot.lane.b32.xlu0 %v346, 127
      %v353 = vpop.permute.xlu0 %352
      %354 = vrot.lane.b32.xlu0 %v347, 127
      %v355 = vpop.permute.xlu0 %354
      %vm356 = vcmask 1039360
      %v357 = vsel %vm356, %v349, %v351
      %v358 = vsel %vm356, %v351, %v353
      %v359 = vsel %vm356, %v353, %v355
      %360 = vrot.lane.b32.xlu0 %v344, 126
      %v361 = vpop.permute.xlu0 %360
      %362 = vrot.lane.b32.xlu0 %v345, 126
      %v363 = vpop.permute.xlu0 %362
      %364 = vrot.lane.b32.xlu0 %v346, 126
      %v365 = vpop.permute.xlu0 %364
      %366 = vrot.lane.b32.xlu0 %v347, 126
      %v367 = vpop.permute.xlu0 %366
      %vm368 = vcmask 1031168
      %v369 = vsel %vm368, %v361, %v363
      %v370 = vsel %vm368, %v363, %v365
      %v371 = vsel %vm368, %v365, %v367
      %372 = vrot.lane.b32.xlu0 %v344, 110
      %v373 = vpop.permute.xlu0 %372
      %374 = vrot.lane.b32.xlu0 %v345, 110
      %v375 = vpop.permute.xlu0 %374
      %376 = vrot.lane.b32.xlu0 %v346, 110
      %v377 = vpop.permute.xlu0 %376
      %378 = vrot.lane.b32.xlu0 %v347, 110
      %v379 = vpop.permute.xlu0 %378
      %vm380 = vcmask 900096
      %v381 = vsel %vm380, %v373, %v375
      %v382 = vsel %vm380, %v375, %v377
      %v383 = vsel %vm380, %v377, %v379
      %384 = vrot.lane.b32.xlu0 %v345, 109
      %v385 = vpop.permute.xlu0 %384
      %386 = vrot.lane.b32.xlu0 %v346, 109
      %v387 = vpop.permute.xlu0 %386
      %388 = vrot.lane.b32.xlu0 %v347, 109
      %v389 = vpop.permute.xlu0 %388
      %vm390 = vcmask 891904
      %v391 = vsel %vm390, %v385, %v387
      %v392 = vsel %vm390, %v387, %v389
      %v394 = vunpack.c.l.b16 %v336
      %v395 = vpack.c.b16 %v394, %v394
      %396 = vrot.lane.b32.xlu0 %v345, 108
      %v397 = vpop.permute.xlu0 %396
      %398 = vrot.lane.b32.xlu0 %v346, 108
      %v399 = vpop.permute.xlu0 %398
      %400 = vrot.lane.b32.xlu0 %v347, 108
      %v401 = vpop.permute.xlu0 %400
      %402 = vrot.lane.b32.xlu0 %v395, 108
      %v403 = vpop.permute.xlu0 %402
      %vm404 = vcmask 883712
      %v405 = vsel %vm404, %v397, %v399
      %v406 = vsel %vm404, %v399, %v401
      %v407 = vsel %vm404, %v401, %v403
      %408 = vrot.lane.b32.xlu0 %v345, 92
      %v409 = vpop.permute.xlu0 %408
      %410 = vrot.lane.b32.xlu0 %v346, 92
      %v411 = vpop.permute.xlu0 %410
      %412 = vrot.lane.b32.xlu0 %v347, 92
      %v413 = vpop.permute.xlu0 %412
      %414 = vrot.lane.b32.xlu0 %v395, 92
      %v415 = vpop.permute.xlu0 %414
      %vm416 = vcmask 752640
      %v417 = vsel %vm416, %v409, %v411
      %v418 = vsel %vm416, %v411, %v413
      %v419 = vsel %vm416, %v413, %v415
      %420 = vrot.lane.b32.xlu0 %v345, 91
      %v421 = vpop.permute.xlu0 %420
      %422 = vrot.lane.b32.xlu0 %v346, 91
      %v423 = vpop.permute.xlu0 %422
      %424 = vrot.lane.b32.xlu0 %v347, 91
      %v425 = vpop.permute.xlu0 %424
      %426 = vrot.lane.b32.xlu0 %v395, 91
      %v427 = vpop.permute.xlu0 %426
      %vm428 = vcmask 744448
      %v429 = vsel %vm428, %v421, %v423
      %v430 = vsel %vm428, %v423, %v425
      %v431 = vsel %vm428, %v425, %v427
      %432 = vrot.lane.b32.xlu0 %v345, 90
      %v433 = vpop.permute.xlu0 %432
      %434 = vrot.lane.b32.xlu0 %v346, 90
      %v435 = vpop.permute.xlu0 %434
      %436 = vrot.lane.b32.xlu0 %v347, 90
      %v437 = vpop.permute.xlu0 %436
      %438 = vrot.lane.b32.xlu0 %v395, 90
      %v439 = vpop.permute.xlu0 %438
      %vm440 = vcmask 736256
      %v441 = vsel %vm440, %v433, %v435
      %v442 = vsel %vm440, %v435, %v437
      %v443 = vsel %vm440, %v437, %v439
      %vm444 = vcmask 1043456
      %v447 = vsel %vm444, %v344, %v357
      %v450 = vsel %vm444, %v345, %v358
      %v453 = vsel %vm444, %v346, %v359
      %v456 = vsel %vm444, %v347, %v355
      %v459 = vsel %vm444, %v369, %v381
      %v462 = vsel %vm444, %v370, %v382
      %v465 = vsel %vm444, %v371, %v383
      %v468 = vsel %vm444, %v367, %v379
      %v471 = vsel %vm444, %v385, %v397
      %v474 = vsel %vm444, %v391, %v405
      %v477 = vsel %vm444, %v392, %v406
      %v480 = vsel %vm444, %v389, %v407
      %v483 = vsel %vm444, %v409, %v421
      %v486 = vsel %vm444, %v417, %v429
      %v489 = vsel %vm444, %v418, %v430
      %v492 = vsel %vm444, %v419, %v431
      %v493 = vld [vmem:[%s2] sm:$0xf]
      %v494 = vld [vmem:[%s2 + $0x4] sm:$0xf]
      %v497 = vunpack.c.l.b16 %v493
      %v498 = vunpack.c.l.b16 %v494
      %v499 = vpack.c.b16 %v498, %v497
      %516 = vrot.lane.b32.xlu0 %v447, 19
      %v517 = vpop.permute.xlu0 %516
      %518 = vrot.lane.b32.xlu0 %v450, 19
      %v519 = vpop.permute.xlu0 %518
      %520 = vrot.lane.b32.xlu0 %v453, 19
      %v521 = vpop.permute.xlu0 %520
      %522 = vrot.lane.b32.xlu0 %v456, 19
      %v523 = vpop.permute.xlu0 %522
      %524 = vrot.lane.b32.xlu0 %v459, 19
      %v525 = vpop.permute.xlu0 %524
      %526 = vrot.lane.b32.xlu0 %v462, 19
      %v527 = vpop.permute.xlu0 %526
      %528 = vrot.lane.b32.xlu0 %v465, 19
      %v529 = vpop.permute.xlu0 %528
      %530 = vrot.lane.b32.xlu0 %v468, 19
      %v531 = vpop.permute.xlu0 %530
      %532 = vrot.lane.b32.xlu0 %v471, 19
      %v533 = vpop.permute.xlu0 %532
      %534 = vrot.lane.b32.xlu0 %v474, 19
      %v535 = vpop.permute.xlu0 %534
      %536 = vrot.lane.b32.xlu0 %v477, 19
      %v537 = vpop.permute.xlu0 %536
      %538 = vrot.lane.b32.xlu0 %v480, 19
      %v539 = vpop.permute.xlu0 %538
      %540 = vrot.lane.b32.xlu0 %v483, 19
      %v541 = vpop.permute.xlu0 %540
      %542 = vrot.lane.b32.xlu0 %v486, 19
      %v543 = vpop.permute.xlu0 %542
      %544 = vrot.lane.b32.xlu0 %v489, 19
      %v545 = vpop.permute.xlu0 %544
      %546 = vrot.lane.b32.xlu0 %v492, 19
      %v547 = vpop.permute.xlu0 %546
      %548 = vrot.lane.b32.xlu0 %v433, 19
      %v549 = vpop.permute.xlu0 %548
      %550 = vrot.lane.b32.xlu0 %v441, 19
      %v551 = vpop.permute.xlu0 %550
      %552 = vrot.lane.b32.xlu0 %v442, 19
      %v553 = vpop.permute.xlu0 %552
      %554 = vrot.lane.b32.xlu0 %v443, 19
      %v555 = vpop.permute.xlu0 %554
      %vm556 = vcmask 154624
      %v557 = vsel %vm556, %v517, %v519
      %v558 = vsel %vm556, %v519, %v521
      %v559 = vsel %vm556, %v521, %v523
      %v560 = vsel %vm556, %v525, %v527
      %v561 = vsel %vm556, %v527, %v529
      %v562 = vsel %vm556, %v529, %v531
      %v563 = vsel %vm556, %v533, %v535
      %v564 = vsel %vm556, %v535, %v537
      %v565 = vsel %vm556, %v537, %v539
      %v566 = vsel %vm556, %v541, %v543
      %v567 = vsel %vm556, %v543, %v545
      %v568 = vsel %vm556, %v545, %v547
      %v569 = vsel %vm556, %v549, %v551
      %v570 = vsel %vm556, %v551, %v553
      %v571 = vsel %vm556, %v553, %v555
      %vm584 = vcmask 588800
      %v586 = vsel %vm584, %v499, 0
      %v589 = vsel %vm444, %v569, 0
      %v592 = vsel %vm444, %v570, 0
      %v595 = vsel %vm444, %v571, 0
      %597 = vmatprep.subr.bf16.mxu0 %v558
      %598 = vmatpush1.bf16.msra.mxu0 %v557
      %599 = vmatprep.subr.bf16.mxu0 %v561
      %600 = vmatpush1.bf16.msra.mxu0 %v560
      %601 = vmatprep.subr.bf16.mxu0 %v564
      %602 = vmatpush1.bf16.msra.mxu0 %v563
      %603 = vmatprep.subr.bf16.mxu0 %v567
      %604 = vmatpush1.bf16.msra.mxu0 %v566
      %605 = vmatprep.subr.bf16.mxu0 %v592
      %606 = vmatpush1.bf16.msra.mxu0 %v589
      %607 = vmatprep.subr.bf16.mxu0 0
      %608 = vmatpush1.bf16.msra.mxu0 0
      %609 = vmatprep.subr.bf16.mxu0 0
      %610 = vmatpush1.bf16.msra.mxu0 0
      %611 = vmatprep.subr.bf16.mxu0 0
      %612 = vmatpush1.bf16.msra.mxu0 0
      %613 = vmatprep.subr.bf16.mxu0 0
      %614 = vmatpush1.bf16.msra.mxu0 0
      %615 = vmatprep.subr.bf16.mxu0 0
      %616 = vmatpush1.bf16.msra.mxu0 0
      %617 = vmatprep.subr.bf16.mxu0 0
      %618 = vmatpush1.bf16.msra.mxu0 0
      %619 = vmatprep.subr.bf16.mxu0 0
      %620 = vmatpush1.bf16.msra.mxu0 0
      %621 = vmatprep.subr.bf16.mxu0 0
      %622 = vmatpush1.bf16.msra.mxu0 0
      %623 = vmatprep.subr.bf16.mxu0 0
      %624 = vmatpush1.bf16.msra.mxu0 0
      %625 = vmatprep.subr.bf16.mxu0 0
      %626 = vmatpush1.bf16.msra.mxu0 0
      %627 = vmatprep.subr.bf16.mxu0 0
      %628 = vmatpush1.bf16.msra.mxu0 0
      %629 = vmatprep.mubr.bf16.mxu0 0
      %630 = vmatmul.mubr.bf16.gmra.mrb[0].mxu0 %v586
      %v631 = vpop.f32.mrb[0].mxu0
      %v632 = vadd.f32 0.0, %v631
      %v633 = vpop.f32.mrb[0].mxu0
      %v634 = vadd.f32 0.0, %v633
      %v635 = vpop.f32.mrb[0].mxu0
      %v636 = vadd.f32 0.0, %v635
      %v637 = vpop.f32.mrb[0].mxu0
      %v638 = vadd.f32 0.0, %v637
      %639 = vdwg.mxu0
      %640 = vmatprep.subr.bf16.mxu0 0
      %641 = vmatpush1.bf16.msra.mxu0 %v559
      %642 = vmatprep.subr.bf16.mxu0 0
      %643 = vmatpush1.bf16.msra.mxu0 %v562
      %644 = vmatprep.subr.bf16.mxu0 0
      %645 = vmatpush1.bf16.msra.mxu0 %v565
      %646 = vmatprep.subr.bf16.mxu0 0
      %647 = vmatpush1.bf16.msra.mxu0 %v568
      %648 = vmatprep.subr.bf16.mxu0 0
      %649 = vmatpush1.bf16.msra.mxu0 %v595
      %650 = vmatprep.subr.bf16.mxu0 0
      %651 = vmatpush1.bf16.msra.mxu0 0
      %652 = vmatprep.subr.bf16.mxu0 0
      %653 = vmatpush1.bf16.msra.mxu0 0
      %654 = vmatprep.subr.bf16.mxu0 0
      %655 = vmatpush1.bf16.msra.mxu0 0
      %656 = vmatprep.subr.bf16.mxu0 0
      %657 = vmatpush1.bf16.msra.mxu0 0
      %658 = vmatprep.subr.bf16.mxu0 0
      %659 = vmatpush1.bf16.msra.mxu0 0
      %660 = vmatprep.subr.bf16.mxu0 0
      %661 = vmatpush1.bf16.msra.mxu0 0
      %662 = vmatprep.subr.bf16.mxu0 0
      %663 = vmatpush1.bf16.msra.mxu0 0
      %664 = vmatprep.subr.bf16.mxu0 0
      %665 = vmatpush1.bf16.msra.mxu0 0
      %666 = vmatprep.subr.bf16.mxu0 0
      %667 = vmatpush1.bf16.msra.mxu0 0
      %668 = vmatprep.subr.bf16.mxu0 0
      %669 = vmatpush1.bf16.msra.mxu0 0
      %670 = vmatprep.subr.bf16.mxu0 0
      %671 = vmatpush1.bf16.msra.mxu0 0
      %672 = vmatprep.mubr.bf16.mxu0 0
      %673 = vmatmul.mubr.bf16.gmra.mrb[0].mxu0 %v586
      %v674 = vpop.f32.mrb[0].mxu0
      %v675 = vadd.f32 0.0, %v674
      %v676 = vpop.f32.mrb[0].mxu0
      %v677 = vpop.f32.mrb[0].mxu0
      %v678 = vadd.f32 0.0, %v677
      %v679 = vpop.f32.mrb[0].mxu0
      %680 = vdwg.mxu0
      %v681 = vld [vmem:[%s3] sm:$0xff]
      %v682 = vld [vmem:[%s3 + $0x8] sm:$0xff]
      %684 = vset.pattern.permute.xlu0 0
      %685 = vperm.xlu0 %684, %v681
      %v686 = vpop.permute.xlu0 %685
      %689 = vset.pattern.permute.xlu0 0
      %690 = vperm.xlu0 %689, %v682
      %v691 = vpop.permute.xlu0 %690
      %v693 = vmul.f32 %v632, %v686
      %v694 = vmul.f32 %v634, %v686
      %v695 = vmul.f32 %v675, %v686
      %v696 = vmul.f32 %v636, %v691
      %v697 = vmul.f32 %v638, %v691
      %v698 = vmul.f32 %v678, %v691
      %v699 = vld [vmem:[%s4] sm:$0xff]
      %v700 = vld [vmem:[%s4 + $0x8] sm:$0xff]
      %702 = vset.pattern.permute.xlu0 0
      %703 = vperm.xlu0 %702, %v699
      %v704 = vpop.permute.xlu0 %703
      %707 = vset.pattern.permute.xlu0 0
      %708 = vperm.xlu0 %707, %v700
      %v709 = vpop.permute.xlu0 %708
      %v711 = vadd.f32 %v693, %v704
      %v712 = vadd.f32 %v694, %v704
      %v713 = vadd.f32 %v695, %v704
      %v714 = vadd.f32 %v696, %v709
      %v715 = vadd.f32 %v697, %v709
      %v716 = vadd.f32 %v698, %v709
      %v717 = vmax.f32 %v711, 0.0
      %v718 = vmax.f32 %v712, 0.0
      %v719 = vmax.f32 %v713, 0.0
      %v720 = vmax.f32 %v714, 0.0
      %v721 = vmax.f32 %v715, 0.0
      %v722 = vmax.f32 %v716, 0.0
      %v724 = vlaneseq
      %v725 = vshrl.u32 %v724, 7
      %v726 = vsub.s32 0, %v725
      %v727 = vrot.slane %v337, %v726
      %v728 = vlaneseq
      %v729 = vshrl.u32 %v728, 7
      %v730 = vsub.s32 1, %v729
      %v731 = vrot.slane %v337, %v730
      %v732 = vlaneseq
      %v733 = vshrl.u32 %v732, 7
      %v734 = vsub.s32 2, %v733
      %v735 = vrot.slane %v337, %v734
      %v739 = vmul.f32 %v717, %v727
      %v740 = vmul.f32 %v718, %v731
      %v741 = vmul.f32 %v719, %v735
      %v742 = vmul.f32 %v720, %v727
      %v743 = vmul.f32 %v721, %v731
      %v744 = vmul.f32 %v722, %v735
      %v745 = vpack.c.bf16 %v742, %v739
      %v746 = vpack.c.bf16 %v743, %v740
      %v747 = vpack.c.bf16 %v744, %v741
      %v748 = vld [vmem:[%s5] sm:$0xff]
      %v749 = vld [vmem:[%s5 + $0x8] sm:$0xff]
      %v750 = vld [vmem:[%s5 + $0x10] sm:$0xff]
      %v751 = vld [vmem:[%s5 + $0x18] sm:$0xff]
      %756 = vrot.lane.b32.xlu0 0, 127
      %v757 = vpop.permute.xlu0 %756
      %758 = vrot.lane.b32.xlu0 %v745, 127
      %v759 = vpop.permute.xlu0 %758
      %760 = vrot.lane.b32.xlu0 %v746, 127
      %v761 = vpop.permute.xlu0 %760
      %762 = vrot.lane.b32.xlu0 %v747, 127
      %v763 = vpop.permute.xlu0 %762
      %v764 = vsel %vm356, %v757, %v759
      %v765 = vsel %vm356, %v759, %v761
      %v766 = vsel %vm356, %v761, %v763
      %767 = vrot.lane.b32.xlu0 0, 126
      %v768 = vpop.permute.xlu0 %767
      %769 = vrot.lane.b32.xlu0 %v745, 126
      %v770 = vpop.permute.xlu0 %769
      %771 = vrot.lane.b32.xlu0 %v746, 126
      %v772 = vpop.permute.xlu0 %771
      %773 = vrot.lane.b32.xlu0 %v747, 126
      %v774 = vpop.permute.xlu0 %773
      %v775 = vsel %vm368, %v768, %v770
      %v776 = vsel %vm368, %v770, %v772
      %v777 = vsel %vm368, %v772, %v774
      %v778 = vsel %vm368, %v774, %v768
      %v783 = vunpack.c.l.b16 %v748
      %v784 = vunpack.c.l.b16 %v749
      %v785 = vunpack.c.l.b16 %v750
      %v786 = vunpack.c.l.b16 %v751
      %v787 = vpack.c.b16 %v784, %v783
      %v788 = vpack.c.b16 %v786, %v785
      %789 = vrot.lane.b32.xlu0 %v787, 80
      %v790 = vpop.permute.xlu0 %789
      %791 = vrot.lane.b32.xlu0 %v788, 80
      %v792 = vpop.permute.xlu0 %791
      %793 = vrot.lane.b32.xlu0 0, 1
      %v794 = vpop.permute.xlu0 %793
      %795 = vrot.lane.b32.xlu0 %v745, 1
      %v796 = vpop.permute.xlu0 %795
      %797 = vrot.lane.b32.xlu0 %v746, 1
      %v798 = vpop.permute.xlu0 %797
      %799 = vrot.lane.b32.xlu0 %v747, 1
      %v800 = vpop.permute.xlu0 %799
      %801 = vrot.lane.b32.xlu0 %v759, 1
      %v802 = vpop.permute.xlu0 %801
      %803 = vrot.lane.b32.xlu0 %v765, 1
      %v804 = vpop.permute.xlu0 %803
      %805 = vrot.lane.b32.xlu0 %v766, 1
      %v806 = vpop.permute.xlu0 %805
      %807 = vrot.lane.b32.xlu0 %v763, 1
      %v808 = vpop.permute.xlu0 %807
      %809 = vrot.lane.b32.xlu0 %v770, 1
      %v810 = vpop.permute.xlu0 %809
      %811 = vrot.lane.b32.xlu0 %v776, 1
      %v812 = vpop.permute.xlu0 %811
      %813 = vrot.lane.b32.xlu0 %v777, 1
      %v814 = vpop.permute.xlu0 %813
      %815 = vrot.lane.b32.xlu0 %v778, 1
      %v816 = vpop.permute.xlu0 %815
      %vm817 = vcmask 7168
      %v818 = vsel %vm817, %v794, %v796
      %v819 = vsel %vm817, %v796, %v798
      %v820 = vsel %vm817, %v798, %v800
      %v821 = vsel %vm817, %v802, %v804
      %v822 = vsel %vm817, %v804, %v806
      %v823 = vsel %vm817, %v806, %v808
      %v824 = vsel %vm817, %v810, %v812
      %v825 = vsel %vm817, %v812, %v814
      %v826 = vsel %vm817, %v814, %v816
      %vm836 = vcmask 392192
      %v838 = vsel %vm836, %v790, 0
      %v841 = vsel %vm836, %v792, 0
      %843 = vmatprep.subr.bf16.mxu0 %v819
      %844 = vmatpush1.bf16.msra.mxu0 %v818
      %845 = vmatprep.subr.bf16.mxu0 %v822
      %846 = vmatpush1.bf16.msra.mxu0 %v821
      %847 = vmatprep.subr.bf16.mxu0 %v825
      %848 = vmatpush1.bf16.msra.mxu0 %v824
      %849 = vmatprep.subr.bf16.mxu0 0
      %850 = vmatpush1.bf16.msra.mxu0 0
      %851 = vmatprep.subr.bf16.mxu0 0
      %852 = vmatpush1.bf16.msra.mxu0 0
      %853 = vmatprep.subr.bf16.mxu0 0
      %854 = vmatpush1.bf16.msra.mxu0 0
      %855 = vmatprep.subr.bf16.mxu0 0
      %856 = vmatpush1.bf16.msra.mxu0 0
      %857 = vmatprep.subr.bf16.mxu0 0
      %858 = vmatpush1.bf16.msra.mxu0 0
      %859 = vmatprep.subr.bf16.mxu0 0
      %860 = vmatpush1.bf16.msra.mxu0 0
      %861 = vmatprep.subr.bf16.mxu0 0
      %862 = vmatpush1.bf16.msra.mxu0 0
      %863 = vmatprep.subr.bf16.mxu0 0
      %864 = vmatpush1.bf16.msra.mxu0 0
      %865 = vmatprep.subr.bf16.mxu0 0
      %866 = vmatpush1.bf16.msra.mxu0 0
      %867 = vmatprep.subr.bf16.mxu0 0
      %868 = vmatpush1.bf16.msra.mxu0 0
      %869 = vmatprep.subr.bf16.mxu0 0
      %870 = vmatpush1.bf16.msra.mxu0 0
      %871 = vmatprep.subr.bf16.mxu0 0
      %872 = vmatpush1.bf16.msra.mxu0 0
      %873 = vmatprep.subr.bf16.mxu0 0
      %874 = vmatpush1.bf16.msra.mxu0 0
      %875 = vmatprep.mubr.bf16.mxu0 0
      %876 = vmatmul.mubr.bf16.gmra.mrb[0].mxu0 %v838
      %v877 = vpop.f32.mrb[0].mxu0
      %v878 = vadd.f32 0.0, %v877
      %v879 = vpop.f32.mrb[0].mxu0
      %v880 = vadd.f32 0.0, %v879
      %v881 = vpop.f32.mrb[0].mxu0
      %v882 = vadd.f32 0.0, %v881
      %v883 = vpop.f32.mrb[0].mxu0
      %v884 = vadd.f32 0.0, %v883
      %885 = vmatprep.mubr.bf16.mxu0 0
      %886 = vmatmul.mubr.bf16.gmra.mrb[0].mxu0 %v841
      %v887 = vpop.f32.mrb[0].mxu0
      %v888 = vadd.f32 0.0, %v887
      %v889 = vpop.f32.mrb[0].mxu0
      %v890 = vadd.f32 0.0, %v889
      %v891 = vpop.f32.mrb[0].mxu0
      %v892 = vadd.f32 0.0, %v891
      %v893 = vpop.f32.mrb[0].mxu0
      %v894 = vadd.f32 0.0, %v893
      %895 = vdwg.mxu0
      %896 = vmatprep.subr.bf16.mxu0 0
      %897 = vmatpush1.bf16.msra.mxu0 %v820
      %898 = vmatprep.subr.bf16.mxu0 0
      %899 = vmatpush1.bf16.msra.mxu0 %v823
      %900 = vmatprep.subr.bf16.mxu0 0
      %901 = vmatpush1.bf16.msra.mxu0 %v826
      %902 = vmatprep.subr.bf16.mxu0 0
      %903 = vmatpush1.bf16.msra.mxu0 0
      %904 = vmatprep.subr.bf16.mxu0 0
      %905 = vmatpush1.bf16.msra.mxu0 0
      %906 = vmatprep.subr.bf16.mxu0 0
      %907 = vmatpush1.bf16.msra.mxu0 0
      %908 = vmatprep.subr.bf16.mxu0 0
      %909 = vmatpush1.bf16.msra.mxu0 0
      %910 = vmatprep.subr.bf16.mxu0 0
      %911 = vmatpush1.bf16.msra.mxu0 0
      %912 = vmatprep.subr.bf16.mxu0 0
      %913 = vmatpush1.bf16.msra.mxu0 0
      %914 = vmatprep.subr.bf16.mxu0 0
      %915 = vmatpush1.bf16.msra.mxu0 0
      %916 = vmatprep.subr.bf16.mxu0 0
      %917 = vmatpush1.bf16.msra.mxu0 0
      %918 = vmatprep.subr.bf16.mxu0 0
      %919 = vmatpush1.bf16.msra.mxu0 0
      %920 = vmatprep.subr.bf16.mxu0 0
      %921 = vmatpush1.bf16.msra.mxu0 0
      %922 = vmatprep.subr.bf16.mxu0 0
      %923 = vmatpush1.bf16.msra.mxu0 0
      %924 = vmatprep.subr.bf16.mxu0 0
      %925 = vmatpush1.bf16.msra.mxu0 0
      %926 = vmatprep.subr.bf16.mxu0 0
      %927 = vmatpush1.bf16.msra.mxu0 0
      %928 = vmatprep.mubr.bf16.mxu0 0
      %929 = vmatmul.mubr.bf16.gmra.mrb[0].mxu0 %v838
      %v930 = vpop.f32.mrb[0].mxu0
      %v931 = vadd.f32 0.0, %v930
      %v932 = vpop.f32.mrb[0].mxu0
      %v933 = vpop.f32.mrb[0].mxu0
      %v934 = vadd.f32 0.0, %v933
      %v935 = vpop.f32.mrb[0].mxu0
      %936 = vmatprep.mubr.bf16.mxu0 0
      %937 = vmatmul.mubr.bf16.gmra.mrb[0].mxu0 %v841
      %v938 = vpop.f32.mrb[0].mxu0
      %v939 = vadd.f32 0.0, %v938
      %v940 = vpop.f32.mrb[0].mxu0
      %v941 = vpop.f32.mrb[0].mxu0
      %v942 = vadd.f32 0.0, %v941
      %v943 = vpop.f32.mrb[0].mxu0
      %944 = vdwg.mxu0
      %945 = vrot.lane.b32.xlu0 0, 19
      %v946 = vpop.permute.xlu0 %945
      %947 = vrot.lane.b32.xlu0 %v745, 19
      %v948 = vpop.permute.xlu0 %947
      %949 = vrot.lane.b32.xlu0 %v746, 19
      %v950 = vpop.permute.xlu0 %949
      %951 = vrot.lane.b32.xlu0 %v747, 19
      %v952 = vpop.permute.xlu0 %951
      %953 = vrot.lane.b32.xlu0 %v764, 19
      %v954 = vpop.permute.xlu0 %953
      %955 = vrot.lane.b32.xlu0 %v765, 19
      %v956 = vpop.permute.xlu0 %955
      %957 = vrot.lane.b32.xlu0 %v766, 19
      %v958 = vpop.permute.xlu0 %957
      %959 = vrot.lane.b32.xlu0 %v763, 19
      %v960 = vpop.permute.xlu0 %959
      %961 = vrot.lane.b32.xlu0 %v775, 19
      %v962 = vpop.permute.xlu0 %961
      %963 = vrot.lane.b32.xlu0 %v776, 19
      %v964 = vpop.permute.xlu0 %963
      %965 = vrot.lane.b32.xlu0 %v777, 19
      %v966 = vpop.permute.xlu0 %965
      %967 = vrot.lane.b32.xlu0 %v774, 19
      %v968 = vpop.permute.xlu0 %967
      %v969 = vsel %vm556, %v946, %v948
      %v970 = vsel %vm556, %v948, %v950
      %v971 = vsel %vm556, %v950, %v952
      %v972 = vsel %vm556, %v954, %v956
      %v973 = vsel %vm556, %v956, %v958
      %v974 = vsel %vm556, %v958, %v960
      %v975 = vsel %vm556, %v962, %v964
      %v976 = vsel %vm556, %v964, %v966
      %v977 = vsel %vm556, %v966, %v968
      %v988 = vsel %vm836, %v787, 0
      %v991 = vsel %vm836, %v788, 0
      %993 = vmatprep.subr.bf16.mxu0 %v970
      %994 = vmatpush1.bf16.msra.mxu0 %v969
      %995 = vmatprep.subr.bf16.mxu0 %v973
      %996 = vmatpush1.bf16.msra.mxu0 %v972
      %997 = vmatprep.subr.bf16.mxu0 %v976
      %998 = vmatpush1.bf16.msra.mxu0 %v975
      %999 = vmatprep.subr.bf16.mxu0 0
      %1000 = vmatpush1.bf16.msra.mxu0 0
      %1001 = vmatprep.subr.bf16.mxu0 0
      %1002 = vmatpush1.bf16.msra.mxu0 0
      %1003 = vmatprep.subr.bf16.mxu0 0
      %1004 = vmatpush1.bf16.msra.mxu0 0
      %1005 = vmatprep.subr.bf16.mxu0 0
      %1006 = vmatpush1.bf16.msra.mxu0 0
      %1007 = vmatprep.subr.bf16.mxu0 0
      %1008 = vmatpush1.bf16.msra.mxu0 0
      %1009 = vmatprep.subr.bf16.mxu0 0
      %1010 = vmatpush1.bf16.msra.mxu0 0
      %1011 = vmatprep.subr.bf16.mxu0 0
      %1012 = vmatpush1.bf16.msra.mxu0 0
      %1013 = vmatprep.subr.bf16.mxu0 0
      %1014 = vmatpush1.bf16.msra.mxu0 0
      %1015 = vmatprep.subr.bf16.mxu0 0
      %1016 = vmatpush1.bf16.msra.mxu0 0
      %1017 = vmatprep.subr.bf16.mxu0 0
      %1018 = vmatpush1.bf16.msra.mxu0 0
      %1019 = vmatprep.subr.bf16.mxu0 0
      %1020 = vmatpush1.bf16.msra.mxu0 0
      %1021 = vmatprep.subr.bf16.mxu0 0
      %1022 = vmatpush1.bf16.msra.mxu0 0
      %1023 = vmatprep.subr.bf16.mxu0 0
      %1024 = vmatpush1.bf16.msra.mxu0 0
      %1025 = vmatprep.mubr.bf16.mxu0 0
      %1026 = vmatmul.mubr.bf16.gmra.mrb[0].mxu0 %v988
      %v1027 = vpop.f32.mrb[0].mxu0
      %v1028 = vadd.f32 %v878, %v1027
      %v1029 = vpop.f32.mrb[0].mxu0
      %v1030 = vadd.f32 %v880, %v1029
      %v1031 = vpop.f32.mrb[0].mxu0
      %v1032 = vadd.f32 %v882, %v1031
      %v1033 = vpop.f32.mrb[0].mxu0
      %v1034 = vadd.f32 %v884, %v1033
      %1035 = vmatprep.mubr.bf16.mxu0 0
      %1036 = vmatmul.mubr.bf16.gmra.mrb[0].mxu0 %v991
      %v1037 = vpop.f32.mrb[0].mxu0
      %v1038 = vadd.f32 %v888, %v1037
      %v1039 = vpop.f32.mrb[0].mxu0
      %v1040 = vadd.f32 %v890, %v1039
      %v1041 = vpop.f32.mrb[0].mxu0
      %v1042 = vadd.f32 %v892, %v1041
      %v1043 = vpop.f32.mrb[0].mxu0
      %v1044 = vadd.f32 %v894, %v1043
      %1045 = vdwg.mxu0
      %1046 = vmatprep.subr.bf16.mxu0 0
      %1047 = vmatpush1.bf16.msra.mxu0 %v971
      %1048 = vmatprep.subr.bf16.mxu0 0
      %1049 = vmatpush1.bf16.msra.mxu0 %v974
      %1050 = vmatprep.subr.bf16.mxu0 0
      %1051 = vmatpush1.bf16.msra.mxu0 %v977
      %1052 = vmatprep.subr.bf16.mxu0 0
      %1053 = vmatpush1.bf16.msra.mxu0 0
      %1054 = vmatprep.subr.bf16.mxu0 0
      %1055 = vmatpush1.bf16.msra.mxu0 0
      %1056 = vmatprep.subr.bf16.mxu0 0
      %1057 = vmatpush1.bf16.msra.mxu0 0
      %1058 = vmatprep.subr.bf16.mxu0 0
      %1059 = vmatpush1.bf16.msra.mxu0 0
      %1060 = vmatprep.subr.bf16.mxu0 0
      %1061 = vmatpush1.bf16.msra.mxu0 0
      %1062 = vmatprep.subr.bf16.mxu0 0
      %1063 = vmatpush1.bf16.msra.mxu0 0
      %1064 = vmatprep.subr.bf16.mxu0 0
      %1065 = vmatpush1.bf16.msra.mxu0 0
      %1066 = vmatprep.subr.bf16.mxu0 0
      %1067 = vmatpush1.bf16.msra.mxu0 0
      %1068 = vmatprep.subr.bf16.mxu0 0
      %1069 = vmatpush1.bf16.msra.mxu0 0
      %1070 = vmatprep.subr.bf16.mxu0 0
      %1071 = vmatpush1.bf16.msra.mxu0 0
      %1072 = vmatprep.subr.bf16.mxu0 0
      %1073 = vmatpush1.bf16.msra.mxu0 0
      %1074 = vmatprep.subr.bf16.mxu0 0
      %1075 = vmatpush1.bf16.msra.mxu0 0
      %1076 = vmatprep.subr.bf16.mxu0 0
      %1077 = vmatpush1.bf16.msra.mxu0 0
      %1078 = vmatprep.mubr.bf16.mxu0 0
      %1079 = vmatmul.mubr.bf16.gmra.mrb[0].mxu0 %v988
      %v1080 = vpop.f32.mrb[0].mxu0
      %v1081 = vadd.f32 %v931, %v1080
      %v1082 = vpop.f32.mrb[0].mxu0
      %v1083 = vpop.f32.mrb[0].mxu0
      %v1084 = vadd.f32 %v934, %v1083
      %v1085 = vpop.f32.mrb[0].mxu0
      %1086 = vmatprep.mubr.bf16.mxu0 0
      %1087 = vmatmul.mubr.bf16.gmra.mrb[0].mxu0 %v991
      %v1088 = vpop.f32.mrb[0].mxu0
      %v1089 = vadd.f32 %v939, %v1088
      %v1090 = vpop.f32.mrb[0].mxu0
      %v1091 = vpop.f32.mrb[0].mxu0
      %v1092 = vadd.f32 %v942, %v1091
      %v1093 = vpop.f32.mrb[0].mxu0
      %1094 = vdwg.mxu0
      %v1095 = vsel %vm356, %v763, %v757
      %v1096 = vunpack.c.h.b16 %v748
      %v1097 = vunpack.c.h.b16 %v749
      %v1098 = vunpack.c.h.b16 %v750
      %v1099 = vunpack.c.h.b16 %v751
      %v1100 = vpack.c.b16 %v1097, %v1096
      %v1101 = vpack.c.b16 %v1099, %v1098
      %1102 = vrot.lane.b32.xlu0 %v787, 32
      %v1103 = vpop.permute.xlu0 %1102
      %1104 = vrot.lane.b32.xlu0 %v1100, 32
      %v1105 = vpop.permute.xlu0 %1104
      %1106 = vrot.lane.b32.xlu0 %v788, 32
      %v1107 = vpop.permute.xlu0 %1106
      %1108 = vrot.lane.b32.xlu0 %v1101, 32
      %v1109 = vpop.permute.xlu0 %1108
      %vm1110 = vcmask 261120
      %v1111 = vsel %vm1110, %v1103, %v1105
      %v1112 = vsel %vm1110, %v1107, %v1109
      %1113 = vrot.lane.b32.xlu0 %v745, 111
      %v1114 = vpop.permute.xlu0 %1113
      %1115 = vrot.lane.b32.xlu0 %v746, 111
      %v1116 = vpop.permute.xlu0 %1115
      %1117 = vrot.lane.b32.xlu0 %v747, 111
      %v1118 = vpop.permute.xlu0 %1117
      %1119 = vrot.lane.b32.xlu0 0, 111
      %v1120 = vpop.permute.xlu0 %1119
      %1121 = vrot.lane.b32.xlu0 %v765, 111
      %v1122 = vpop.permute.xlu0 %1121
      %1123 = vrot.lane.b32.xlu0 %v766, 111
      %v1124 = vpop.permute.xlu0 %1123
      %1125 = vrot.lane.b32.xlu0 %v1095, 111
      %v1126 = vpop.permute.xlu0 %1125
      %1127 = vrot.lane.b32.xlu0 %v757, 111
      %v1128 = vpop.permute.xlu0 %1127
      %1129 = vrot.lane.b32.xlu0 %v776, 111
      %v1130 = vpop.permute.xlu0 %1129
      %1131 = vrot.lane.b32.xlu0 %v777, 111
      %v1132 = vpop.permute.xlu0 %1131
      %1133 = vrot.lane.b32.xlu0 %v778, 111
      %v1134 = vpop.permute.xlu0 %1133
      %1135 = vrot.lane.b32.xlu0 %v768, 111
      %v1136 = vpop.permute.xlu0 %1135
      %vm1137 = vcmask 908288
      %v1138 = vsel %vm1137, %v1114, %v1116
      %v1139 = vsel %vm1137, %v1116, %v1118
      %v1140 = vsel %vm1137, %v1118, %v1120
      %v1141 = vsel %vm1137, %v1122, %v1124
      %v1142 = vsel %vm1137, %v1124, %v1126
      %v1143 = vsel %vm1137, %v1126, %v1128
      %v1144 = vsel %vm1137, %v1130, %v1132
      %v1145 = vsel %vm1137, %v1132, %v1134
      %v1146 = vsel %vm1137, %v1134, %v1136
      %v1157 = vsel %vm836, %v1111, 0
      %v1160 = vsel %vm836, %v1112, 0
      %1162 = vmatprep.subr.bf16.mxu0 %v1139
      %1163 = vmatpush1.bf16.msra.mxu0 %v1138
      %1164 = vmatprep.subr.bf16.mxu0 %v1142
      %1165 = vmatpush1.bf16.msra.mxu0 %v1141
      %1166 = vmatprep.subr.bf16.mxu0 %v1145
      %1167 = vmatpush1.bf16.msra.mxu0 %v1144
      %1168 = vmatprep.subr.bf16.mxu0 0
      %1169 = vmatpush1.bf16.msra.mxu0 0
      %1170 = vmatprep.subr.bf16.mxu0 0
      %1171 = vmatpush1.bf16.msra.mxu0 0
      %1172 = vmatprep.subr.bf16.mxu0 0
      %1173 = vmatpush1.bf16.msra.mxu0 0
      %1174 = vmatprep.subr.bf16.mxu0 0
      %1175 = vmatpush1.bf16.msra.mxu0 0
      %1176 = vmatprep.subr.bf16.mxu0 0
      %1177 = vmatpush1.bf16.msra.mxu0 0
      %1178 = vmatprep.subr.bf16.mxu0 0
      %1179 = vmatpush1.bf16.msra.mxu0 0
      %1180 = vmatprep.subr.bf16.mxu0 0
      %1181 = vmatpush1.bf16.msra.mxu0 0
      %1182 = vmatprep.subr.bf16.mxu0 0
      %1183 = vmatpush1.bf16.msra.mxu0 0
      %1184 = vmatprep.subr.bf16.mxu0 0
      %1185 = vmatpush1.bf16.msra.mxu0 0
      %1186 = vmatprep.subr.bf16.mxu0 0
      %1187 = vmatpush1.bf16.msra.mxu0 0
      %1188 = vmatprep.subr.bf16.mxu0 0
      %1189 = vmatpush1.bf16.msra.mxu0 0
      %1190 = vmatprep.subr.bf16.mxu0 0
      %1191 = vmatpush1.bf16.msra.mxu0 0
      %1192 = vmatprep.subr.bf16.mxu0 0
      %1193 = vmatpush1.bf16.msra.mxu0 0
      %1194 = vmatprep.mubr.bf16.mxu0 0
      %1195 = vmatmul.mubr.bf16.gmra.mrb[0].mxu0 %v1157
      %v1196 = vpop.f32.mrb[0].mxu0
      %v1197 = vadd.f32 0.0, %v1196
      %v1198 = vpop.f32.mrb[0].mxu0
      %v1199 = vadd.f32 0.0, %v1198
      %v1200 = vpop.f32.mrb[0].mxu0
      %v1201 = vadd.f32 0.0, %v1200
      %v1202 = vpop.f32.mrb[0].mxu0
      %v1203 = vadd.f32 0.0, %v1202
      %1204 = vmatprep.mubr.bf16.mxu0 0
      %1205 = vmatmul.mubr.bf16.gmra.mrb[0].mxu0 %v1160
      %v1206 = vpop.f32.mrb[0].mxu0
      %v1207 = vadd.f32 0.0, %v1206
      %v1208 = vpop.f32.mrb[0].mxu0
      %v1209 = vadd.f32 0.0, %v1208
      %v1210 = vpop.f32.mrb[0].mxu0
      %v1211 = vadd.f32 0.0, %v1210
      %v1212 = vpop.f32.mrb[0].mxu0
      %v1213 = vadd.f32 0.0, %v1212
      %1214 = vdwg.mxu0
      %1215 = vmatprep.subr.bf16.mxu0 0
      %1216 = vmatpush1.bf16.msra.mxu0 %v1140
      %1217 = vmatprep.subr.bf16.mxu0 0
      %1218 = vmatpush1.bf16.msra.mxu0 %v1143
      %1219 = vmatprep.subr.bf16.mxu0 0
      %1220 = vmatpush1.bf16.msra.mxu0 %v1146
      %1221 = vmatprep.subr.bf16.mxu0 0
      %1222 = vmatpush1.bf16.msra.mxu0 0
      %1223 = vmatprep.subr.bf16.mxu0 0
      %1224 = vmatpush1.bf16.msra.mxu0 0
      %1225 = vmatprep.subr.bf16.mxu0 0
      %1226 = vmatpush1.bf16.msra.mxu0 0
      %1227 = vmatprep.subr.bf16.mxu0 0
      %1228 = vmatpush1.bf16.msra.mxu0 0
      %1229 = vmatprep.subr.bf16.mxu0 0
      %1230 = vmatpush1.bf16.msra.mxu0 0
      %1231 = vmatprep.subr.bf16.mxu0 0
      %1232 = vmatpush1.bf16.msra.mxu0 0
      %1233 = vmatprep.subr.bf16.mxu0 0
      %1234 = vmatpush1.bf16.msra.mxu0 0
      %1235 = vmatprep.subr.bf16.mxu0 0
      %1236 = vmatpush1.bf16.msra.mxu0 0
      %1237 = vmatprep.subr.bf16.mxu0 0
      %1238 = vmatpush1.bf16.msra.mxu0 0
      %1239 = vmatprep.subr.bf16.mxu0 0
      %1240 = vmatpush1.bf16.msra.mxu0 0
      %1241 = vmatprep.subr.bf16.mxu0 0
      %1242 = vmatpush1.bf16.msra.mxu0 0
      %1243 = vmatprep.subr.bf16.mxu0 0
      %1244 = vmatpush1.bf16.msra.mxu0 0
      %1245 = vmatprep.subr.bf16.mxu0 0
      %1246 = vmatpush1.bf16.msra.mxu0 0
      %1247 = vmatprep.mubr.bf16.mxu0 0
      %1248 = vmatmul.mubr.bf16.gmra.mrb[0].mxu0 %v1157
      %v1249 = vpop.f32.mrb[0].mxu0
      %v1250 = vadd.f32 0.0, %v1249
      %v1251 = vpop.f32.mrb[0].mxu0
      %v1252 = vpop.f32.mrb[0].mxu0
      %v1253 = vadd.f32 0.0, %v1252
      %v1254 = vpop.f32.mrb[0].mxu0
      %1255 = vmatprep.mubr.bf16.mxu0 0
      %1256 = vmatmul.mubr.bf16.gmra.mrb[0].mxu0 %v1160
      %v1257 = vpop.f32.mrb[0].mxu0
      %v1258 = vadd.f32 0.0, %v1257
      %v1259 = vpop.f32.mrb[0].mxu0
      %v1260 = vpop.f32.mrb[0].mxu0
      %v1261 = vadd.f32 0.0, %v1260
      %v1262 = vpop.f32.mrb[0].mxu0
      %1263 = vdwg.mxu0
      %v1264 = vadd.f32 %v1028, %v1197
      %v1265 = vadd.f32 %v1030, %v1199
      %v1266 = vadd.f32 %v1081, %v1250
      %v1267 = vadd.f32 %v1032, %v1201
      %v1268 = vadd.f32 %v1034, %v1203
      %v1269 = vadd.f32 %v1084, %v1253
      %v1270 = vadd.f32 %v1038, %v1207
      %v1271 = vadd.f32 %v1040, %v1209
      %v1272 = vadd.f32 %v1089, %v1258
      %v1273 = vadd.f32 %v1042, %v1211
      %v1274 = vadd.f32 %v1044, %v1213
      %v1275 = vadd.f32 %v1092, %v1261
      %v1276 = vld [vmem:[%s6] sm:$0xff]
      %v1277 = vld [vmem:[%s6 + $0x8] sm:$0xff]
      %v1278 = vld [vmem:[%s6 + $0x10] sm:$0xff]
      %v1279 = vld [vmem:[%s6 + $0x18] sm:$0xff]
      %1281 = vset.pattern.permute.xlu0 0
      %1282 = vperm.xlu0 %1281, %v1276
      %v1283 = vpop.permute.xlu0 %1282
      %1286 = vset.pattern.permute.xlu0 0
      %1287 = vperm.xlu0 %1286, %v1277
      %v1288 = vpop.permute.xlu0 %1287
      %1291 = vset.pattern.permute.xlu0 0
      %1292 = vperm.xlu0 %1291, %v1278
      %v1293 = vpop.permute.xlu0 %1292
      %1296 = vset.pattern.permute.xlu0 0
      %1297 = vperm.xlu0 %1296, %v1279
      %v1298 = vpop.permute.xlu0 %1297
      %v1300 = vmul.f32 %v1264, %v1283
      %v1301 = vmul.f32 %v1265, %v1283
      %v1302 = vmul.f32 %v1266, %v1283
      %v1303 = vmul.f32 %v1267, %v1288
      %v1304 = vmul.f32 %v1268, %v1288
      %v1305 = vmul.f32 %v1269, %v1288
      %v1306 = vmul.f32 %v1270, %v1293
      %v1307 = vmul.f32 %v1271, %v1293
      %v1308 = vmul.f32 %v1272, %v1293
      %v1309 = vmul.f32 %v1273, %v1298
      %v1310 = vmul.f32 %v1274, %v1298
      %v1311 = vmul.f32 %v1275, %v1298
      %v1312 = vld [vmem:[%s7] sm:$0xff]
      %v1313 = vld [vmem:[%s7 + $0x8] sm:$0xff]
      %v1314 = vld [vmem:[%s7 + $0x10] sm:$0xff]
      %v1315 = vld [vmem:[%s7 + $0x18] sm:$0xff]
      %1317 = vset.pattern.permute.xlu0 0
      %1318 = vperm.xlu0 %1317, %v1312
      %v1319 = vpop.permute.xlu0 %1318
      %1322 = vset.pattern.permute.xlu0 0
      %1323 = vperm.xlu0 %1322, %v1313
      %v1324 = vpop.permute.xlu0 %1323
      %1327 = vset.pattern.permute.xlu0 0
      %1328 = vperm.xlu0 %1327, %v1314
      %v1329 = vpop.permute.xlu0 %1328
      %1332 = vset.pattern.permute.xlu0 0
      %1333 = vperm.xlu0 %1332, %v1315
      %v1334 = vpop.permute.xlu0 %1333
      %v1336 = vadd.f32 %v1300, %v1319
      %v1337 = vadd.f32 %v1301, %v1319
      %v1338 = vadd.f32 %v1302, %v1319
      %v1339 = vadd.f32 %v1303, %v1324
      %v1340 = vadd.f32 %v1304, %v1324
      %v1341 = vadd.f32 %v1305, %v1324
      %v1342 = vadd.f32 %v1306, %v1329
      %v1343 = vadd.f32 %v1307, %v1329
      %v1344 = vadd.f32 %v1308, %v1329
      %v1345 = vadd.f32 %v1309, %v1334
      %v1346 = vadd.f32 %v1310, %v1334
      %v1347 = vadd.f32 %v1311, %v1334
      %v1348 = vmax.f32 %v1336, 0.0
      %v1349 = vmax.f32 %v1337, 0.0
      %v1350 = vmax.f32 %v1338, 0.0
      %v1351 = vmax.f32 %v1339, 0.0
      %v1352 = vmax.f32 %v1340, 0.0
      %v1353 = vmax.f32 %v1341, 0.0
      %v1354 = vmax.f32 %v1342, 0.0
      %v1355 = vmax.f32 %v1343, 0.0
      %v1356 = vmax.f32 %v1344, 0.0
      %v1357 = vmax.f32 %v1345, 0.0
      %v1358 = vmax.f32 %v1346, 0.0
      %v1359 = vmax.f32 %v1347, 0.0
      %v1360 = vpack.c.bf16 %v1351, %v1348
      %v1361 = vpack.c.bf16 %v1352, %v1349
      %v1362 = vpack.c.bf16 %v1353, %v1350
      %v1363 = vpack.c.bf16 %v1357, %v1354
      %v1364 = vpack.c.bf16 %v1358, %v1355
      %v1365 = vpack.c.bf16 %v1359, %v1356
      %v1366 = vld [vmem:[%s8] sm:$0xf]
      %v1367 = vld [vmem:[%s8 + $0x4] sm:$0xf]
      %v1368 = vld [vmem:[%s8 + $0x8] sm:$0xf]
      %v1369 = vld [vmem:[%s8 + $0xc] sm:$0xf]
      %v1370 = vld [vmem:[%s8 + $0x10] sm:$0xf]
      %v1371 = vld [vmem:[%s8 + $0x14] sm:$0xf]
      %v1372 = vld [vmem:[%s8 + $0x18] sm:$0xf]
      %v1373 = vld [vmem:[%s8 + $0x1c] sm:$0xf]
      %v1374 = vld [vmem:[%s8 + $0x20] sm:$0xf]
      %v1375 = vld [vmem:[%s8 + $0x24] sm:$0xf]
      %v1376 = vld [vmem:[%s8 + $0x28] sm:$0xf]
      %v1377 = vld [vmem:[%s8 + $0x2c] sm:$0xf]
      %v1378 = vld [vmem:[%s8 + $0x30] sm:$0xf]
      %v1379 = vld [vmem:[%s8 + $0x34] sm:$0xf]
      %v1380 = vld [vmem:[%s8 + $0x38] sm:$0xf]
      %v1381 = vld [vmem:[%s8 + $0x3c] sm:$0xf]
      %v1382 = vld [vmem:[%s8 + $0x40] sm:$0xf]
      %v1383 = vld [vmem:[%s8 + $0x44] sm:$0xf]
      %v1384 = vld [vmem:[%s8 + $0x48] sm:$0xf]
      %v1385 = vld [vmem:[%s8 + $0x4c] sm:$0xf]
      %v1386 = vld [vmem:[%s8 + $0x50] sm:$0xf]
      %v1387 = vld [vmem:[%s8 + $0x54] sm:$0xf]
      %v1388 = vld [vmem:[%s8 + $0x58] sm:$0xf]
      %v1389 = vld [vmem:[%s8 + $0x5c] sm:$0xf]
      %v1390 = vld [vmem:[%s8 + $0x60] sm:$0xf]
      %v1391 = vld [vmem:[%s8 + $0x64] sm:$0xf]
      %v1392 = vld [vmem:[%s8 + $0x68] sm:$0xf]
      %v1393 = vld [vmem:[%s8 + $0x6c] sm:$0xf]
      %v1394 = vld [vmem:[%s8 + $0x70] sm:$0xf]
      %v1395 = vld [vmem:[%s8 + $0x74] sm:$0xf]
      %v1396 = vld [vmem:[%s8 + $0x78] sm:$0xf]
      %v1397 = vld [vmem:[%s8 + $0x7c] sm:$0xf]
      %v1398 = vld [vmem:[%s8 + $0x80] sm:$0xf]
      %v1399 = vld [vmem:[%s8 + $0x84] sm:$0xf]
      %v1400 = vld [vmem:[%s8 + $0x88] sm:$0xf]
      %v1401 = vld [vmem:[%s8 + $0x8c] sm:$0xf]
      %v1402 = vld [vmem:[%s8 + $0x90] sm:$0xf]
      %v1403 = vld [vmem:[%s8 + $0x94] sm:$0xf]
      %v1404 = vld [vmem:[%s8 + $0x98] sm:$0xf]
      %v1405 = vld [vmem:[%s8 + $0x9c] sm:$0xf]
      %v1406 = vld [vmem:[%s8 + $0xa0] sm:$0xf]
      %v1407 = vld [vmem:[%s8 + $0xa4] sm:$0xf]
      %v1408 = vld [vmem:[%s8 + $0xa8] sm:$0xf]
      %v1409 = vld [vmem:[%s8 + $0xac] sm:$0xf]
      %v1410 = vld [vmem:[%s8 + $0xb0] sm:$0xf]
      %v1411 = vld [vmem:[%s8 + $0xb4] sm:$0xf]
      %v1412 = vld [vmem:[%s8 + $0xb8] sm:$0xf]
      %v1413 = vld [vmem:[%s8 + $0xbc] sm:$0xf]
      %v1462 = vunpack.c.l.b16 %v1366
      %v1463 = vunpack.c.l.b16 %v1367
      %v1464 = vunpack.c.l.b16 %v1368
      %v1465 = vunpack.c.l.b16 %v1369
      %v1466 = vunpack.c.l.b16 %v1370
      %v1467 = vunpack.c.l.b16 %v1371
      %v1468 = vunpack.c.l.b16 %v1372
      %v1469 = vunpack.c.l.b16 %v1373
      %v1470 = vunpack.c.l.b16 %v1374
      %v1471 = vunpack.c.l.b16 %v1375
      %v1472 = vunpack.c.l.b16 %v1376
      %v1473 = vunpack.c.l.b16 %v1377
      %v1474 = vunpack.c.l.b16 %v1378
      %v1475 = vunpack.c.l.b16 %v1379
      %v1476 = vunpack.c.l.b16 %v1380
      %v1477 = vunpack.c.l.b16 %v1381
      %v1478 = vunpack.c.l.b16 %v1382
      %v1479 = vunpack.c.l.b16 %v1383
      %v1480 = vunpack.c.l.b16 %v1384
      %v1481 = vunpack.c.l.b16 %v1385
      %v1482 = vunpack.c.l.b16 %v1386
      %v1483 = vunpack.c.l.b16 %v1387
      %v1484 = vunpack.c.l.b16 %v1388
      %v1485 = vunpack.c.l.b16 %v1389
      %v1486 = vunpack.c.l.b16 %v1390
      %v1487 = vunpack.c.l.b16 %v1391
      %v1488 = vunpack.c.l.b16 %v1392
      %v1489 = vunpack.c.l.b16 %v1393
      %v1490 = vunpack.c.l.b16 %v1394
      %v1491 = vunpack.c.l.b16 %v1395
      %v1492 = vunpack.c.l.b16 %v1396
      %v1493 = vunpack.c.l.b16 %v1397
      %v1494 = vunpack.c.l.b16 %v1398
      %v1495 = vunpack.c.l.b16 %v1399
      %v1496 = vunpack.c.l.b16 %v1400
      %v1497 = vunpack.c.l.b16 %v1401
      %v1498 = vunpack.c.l.b16 %v1402
      %v1499 = vunpack.c.l.b16 %v1403
      %v1500 = vunpack.c.l.b16 %v1404
      %v1501 = vunpack.c.l.b16 %v1405
      %v1502 = vunpack.c.l.b16 %v1406
      %v1503 = vunpack.c.l.b16 %v1407
      %v1504 = vunpack.c.l.b16 %v1408
      %v1505 = vunpack.c.l.b16 %v1409
      %v1506 = vunpack.c.l.b16 %v1410
      %v1507 = vunpack.c.l.b16 %v1411
      %v1508 = vunpack.c.l.b16 %v1412
      %v1509 = vunpack.c.l.b16 %v1413
      %v1510 = vpack.c.b16 %v1463, %v1462
      %v1511 = vpack.c.b16 %v1465, %v1464
      %v1512 = vpack.c.b16 %v1467, %v1466
      %v1513 = vpack.c.b16 %v1469, %v1468
      %v1514 = vpack.c.b16 %v1471, %v1470
      %v1515 = vpack.c.b16 %v1473, %v1472
      %v1516 = vpack.c.b16 %v1475, %v1474
      %v1517 = vpack.c.b16 %v1477, %v1476
      %v1518 = vpack.c.b16 %v1479, %v1478
      %v1519 = vpack.c.b16 %v1481, %v1480
      %v1520 = vpack.c.b16 %v1483, %v1482
      %v1521 = vpack.c.b16 %v1485, %v1484
      %v1522 = vpack.c.b16 %v1487, %v1486
      %v1523 = vpack.c.b16 %v1489, %v1488
      %v1524 = vpack.c.b16 %v1491, %v1490
      %v1525 = vpack.c.b16 %v1493, %v1492
      %v1526 = vpack.c.b16 %v1495, %v1494
      %v1527 = vpack.c.b16 %v1497, %v1496
      %v1528 = vpack.c.b16 %v1499, %v1498
      %v1529 = vpack.c.b16 %v1501, %v1500
      %v1530 = vpack.c.b16 %v1503, %v1502
      %v1531 = vpack.c.b16 %v1505, %v1504
      %v1532 = vpack.c.b16 %v1507, %v1506
      %v1533 = vpack.c.b16 %v1509, %v1508
      %1558 = vmatprep.subr.bf16.mxu0 0
      %1559 = vmatpush1.bf16.msra.mxu0 %v1510
      %1560 = vmatprep.subr.bf16.mxu0 0
      %1561 = vmatpush1.bf16.msra.mxu0 %v1511
      %1562 = vmatprep.subr.bf16.mxu0 0
      %1563 = vmatpush1.bf16.msra.mxu0 %v1512
      %1564 = vmatprep.subr.bf16.mxu0 0
      %1565 = vmatpush1.bf16.msra.mxu0 %v1513
      %1566 = vmatprep.subr.bf16.mxu0 0
      %1567 = vmatpush1.bf16.msra.mxu0 %v1514
      %1568 = vmatprep.subr.bf16.mxu0 0
      %1569 = vmatpush1.bf16.msra.mxu0 %v1515
      %1570 = vmatprep.subr.bf16.mxu0 0
      %1571 = vmatpush1.bf16.msra.mxu0 %v1516
      %1572 = vmatprep.subr.bf16.mxu0 0
      %1573 = vmatpush1.bf16.msra.mxu0 %v1517
      %1574 = vmatprep.subr.bf16.mxu0 0
      %1575 = vmatpush1.bf16.msra.mxu0 %v1518
      %1576 = vmatprep.subr.bf16.mxu0 0
      %1577 = vmatpush1.bf16.msra.mxu0 %v1519
      %1578 = vmatprep.subr.bf16.mxu0 0
      %1579 = vmatpush1.bf16.msra.mxu0 %v1520
      %1580 = vmatprep.subr.bf16.mxu0 0
      %1581 = vmatpush1.bf16.msra.mxu0 %v1521
      %1582 = vmatprep.subr.bf16.mxu0 0
      %1583 = vmatpush1.bf16.msra.mxu0 %v1522
      %1584 = vmatprep.subr.bf16.mxu0 0
      %1585 = vmatpush1.bf16.msra.mxu0 %v1523
      %1586 = vmatprep.subr.bf16.mxu0 0
      %1587 = vmatpush1.bf16.msra.mxu0 %v1524
      %1588 = vmatprep.subr.bf16.mxu0 0
      %1589 = vmatpush1.bf16.msra.mxu0 %v1525
      %1590 = vmatprep.mubr.bf16.mxu0 %v1361
      %1591 = vmatmul.mubr.bf16.gmra.mrb[0].mxu0 %v1360
      %v1592 = vpop.f32.mrb[0].mxu0
      %v1593 = vadd.f32 0.0, %v1592
      %v1594 = vpop.f32.mrb[0].mxu0
      %v1595 = vpop.f32.mrb[0].mxu0
      %v1596 = vadd.f32 0.0, %v1595
      %v1597 = vpop.f32.mrb[0].mxu0
      %1598 = vmatprep.mubr.bf16.mxu0 %v1364
      %1599 = vmatmul.mubr.bf16.gmra.mrb[0].mxu0 %v1363
      %v1600 = vpop.f32.mrb[0].mxu0
      %v1601 = vadd.f32 0.0, %v1600
      %v1602 = vpop.f32.mrb[0].mxu0
      %v1603 = vpop.f32.mrb[0].mxu0
      %v1604 = vadd.f32 0.0, %v1603
      %v1605 = vpop.f32.mrb[0].mxu0
      %1606 = vdwg.mxu0
      %1607 = vmatprep.subr.bf16.mxu0 0
      %1608 = vmatpush1.bf16.msra.mxu0 %v1526
      %1609 = vmatprep.subr.bf16.mxu0 0
      %1610 = vmatpush1.bf16.msra.mxu0 %v1527
      %1611 = vmatprep.subr.bf16.mxu0 0
      %1612 = vmatpush1.bf16.msra.mxu0 %v1528
      %1613 = vmatprep.subr.bf16.mxu0 0
      %1614 = vmatpush1.bf16.msra.mxu0 %v1529
      %1615 = vmatprep.subr.bf16.mxu0 0
      %1616 = vmatpush1.bf16.msra.mxu0 %v1530
      %1617 = vmatprep.subr.bf16.mxu0 0
      %1618 = vmatpush1.bf16.msra.mxu0 %v1531
      %1619 = vmatprep.subr.bf16.mxu0 0
      %1620 = vmatpush1.bf16.msra.mxu0 %v1532
      %1621 = vmatprep.subr.bf16.mxu0 0
      %1622 = vmatpush1.bf16.msra.mxu0 %v1533
      %1623 = vmatprep.subr.bf16.mxu0 0
      %1624 = vmatpush1.bf16.msra.mxu0 0
      %1625 = vmatprep.subr.bf16.mxu0 0
      %1626 = vmatpush1.bf16.msra.mxu0 0
      %1627 = vmatprep.subr.bf16.mxu0 0
      %1628 = vmatpush1.bf16.msra.mxu0 0
      %1629 = vmatprep.subr.bf16.mxu0 0
      %1630 = vmatpush1.bf16.msra.mxu0 0
      %1631 = vmatprep.subr.bf16.mxu0 0
      %1632 = vmatpush1.bf16.msra.mxu0 0
      %1633 = vmatprep.subr.bf16.mxu0 0
      %1634 = vmatpush1.bf16.msra.mxu0 0
      %1635 = vmatprep.subr.bf16.mxu0 0
      %1636 = vmatpush1.bf16.msra.mxu0 0
      %1637 = vmatprep.subr.bf16.mxu0 0
      %1638 = vmatpush1.bf16.msra.mxu0 0
      %1639 = vmatprep.mubr.bf16.mxu0 0
      %1640 = vmatmul.mubr.bf16.gmra.mrb[0].mxu0 %v1362
      %v1641 = vpop.f32.mrb[0].mxu0
      %v1642 = vadd.f32 %v1593, %v1641
      %v1643 = vpop.f32.mrb[0].mxu0
      %v1644 = vpop.f32.mrb[0].mxu0
      %v1645 = vadd.f32 %v1596, %v1644
      %v1646 = vpop.f32.mrb[0].mxu0
      %1647 = vmatprep.mubr.bf16.mxu0 0
      %1648 = vmatmul.mubr.bf16.gmra.mrb[0].mxu0 %v1365
      %v1649 = vpop.f32.mrb[0].mxu0
      %v1650 = vadd.f32 %v1601, %v1649
      %v1651 = vpop.f32.mrb[0].mxu0
      %v1652 = vpop.f32.mrb[0].mxu0
      %v1653 = vadd.f32 %v1604, %v1652
      %v1654 = vpop.f32.mrb[0].mxu0
      %1655 = vdwg.mxu0
      %vm1656 = vcmask 7168
      %1657 = vst.msk [vmem:[%s332] sm:$0xff] %vm1656, %v1642
      %1658 = vst.msk [vmem:[%s332 + $0x8] sm:$0xff] %vm1656, %v1645
      %1659 = vst.msk [vmem:[%s332 + $0x10] sm:$0xff] %vm1656, %v1650
      %1660 = vst.msk [vmem:[%s332 + $0x18] sm:$0xff] %vm1656, %v1653
      %p1661 = scmp.lt.s32.totalorder %s20, 1
      %s1662 = scalar_select %p1661, %s20, 1
      %s1663 = smul.addr %s1662, 4
      %s1664 = smul.addr %s1663, 8
      %s1665 = scalar_lea.vmem %s9, %s1664
      // Predicated region
      $region57: #{_tiny_cnn_impl.1} parent=55 // pred_check
        %p1666 = pneg %p232
      $region58: #{_tiny_cnn_impl.1} parent=55 // pred_check_branch
        %1668 = sbr.rel (%p1666) target = $region60
      $region59: #{_tiny_cnn_impl.1} parent=55 // pred_region
        _
      $region60: #{_tiny_cnn_impl.1} parent=55 // pred_fallthru
        _
    $region56: #{_tiny_cnn_impl.1} parent=5 // pred_fallthru
      _
    %p1669 = scmp.le.s32.totalorder 2, %s15
    // Predicated region
    $region61: #{_tiny_cnn_impl.1} parent=5 // pred_check
      %p1670 = pneg %p1669
    $region62: #{_tiny_cnn_impl.1} parent=5 // pred_check_branch
      %1672 = sbr.rel (%p1670) target = $region64
    $region63: #{_tiny_cnn_impl.1} parent=5 // pred_region
      %s1673 = ssub.s32 %s15, 2
      // Predicated region
      $region65: #{_tiny_cnn_impl.1} parent=63 // pred_check
        %p1674 = pneg %p238
      $region66: #{_tiny_cnn_impl.1} parent=63 // pred_check_branch
        %1676 = sbr.rel (%p1674) target = $region68
      $region67: #{_tiny_cnn_impl.1} parent=63 // pred_region
        %p1677 = scmp.lt.s32.totalorder %s21, 1
        %s1678 = scalar_select %p1677, %s21, 1
        %s1679 = smul.addr %s1678, 4
        %s1680 = smul.addr %s1679, 8
        %s1681 = scalar_lea.vmem %s9, %s1680
      $region68: #{_tiny_cnn_impl.1} parent=63 // pred_fallthru
        _
    $region64: #{_tiny_cnn_impl.1} parent=5 // pred_fallthru
      _
  $region6: #{_tiny_cnn_impl.1} parent=0 // loop_footer
    %s19 = sadd.s32 1, %s15
  $region7: #{_tiny_cnn_impl.1} parent=0 // loop_footer_branch
    %14 = sbr.rel target = $region3
  $region8: #{_tiny_cnn_impl.1} parent=0 // loop_exit
    _

</llo_original>
